<compile_context>
chip_gen: v5e
topology: v5e:2x2
jax: 0.10.0
libtpu: 0.0.40
codegen_flags: <defaults>
</compile_context>

<pallas_src>
import functools

import jax
import jax.numpy as jnp
from jax import lax
from jax.experimental import pallas as pl
from jax.experimental.pallas import tpu as pltpu

EPS = 1e-8


def _activation_unit_kernel(x12_ref, w1ac_ref, w1b_ref, p_ref, out_ref, *, d1):
    # x12_ref : (TB, N, D1+D2)   per-tile pair data (item1 | item2 concatenated)
    # w1ac_ref: (D1+D2, H)       resident  (rows of W1 for item1 and item2)
    # w1b_ref : (N, H)           resident  (rows of W1 for the cross block)
    # p_ref   : (8, H)           resident  packed small params:
    #                            row0=b1, row1=alpha, row2=beta, row3=w2[:,0], row4[0]=b2
    # out_ref : (TB, N)
    tb, n, k = x12_ref.shape
    h_dim = w1ac_ref.shape[1]

    x12 = x12_ref[...]                      # f32 already; no redundant cast
    i1 = x12[:, :, :d1]                     # (TB, N, D1)
    i2 = x12[:, :, d1:]                     # (TB, N, D2)

    # Per-pair cross = item1 @ item2.T, contracted without materializing a transpose.
    cross = lax.dot_general(
        i1, i2,
        dimension_numbers=(((2,), (2,)), ((0,), (0,))),
        preferred_element_type=jnp.float32)                     # (TB, N, N)

    # Linear1 on cat([item1, cross, item2], -1) without building the concat:
    #   x12 @ W1ac + cross @ W1b + b1      (W1 split row-wise; W1a/W1c pre-concatenated)
    b1 = p_ref[0:1, :]                                          # (1, H)
    h2d = (
        jnp.dot(x12.reshape(tb * n, k), w1ac_ref[...],
                preferred_element_type=jnp.float32)
        + jnp.dot(cross.reshape(tb * n, n), w1b_ref[...],
                  preferred_element_type=jnp.float32)
        + b1
    )                                                           # (TB*N, H)
    h = h2d.reshape(tb, n, h_dim)                               # (TB, N, H)

    # BatchNorm1d (training-mode batch stats) computed WITHIN each pair's N rows.
    mean = jnp.mean(h, axis=1, keepdims=True)                   # (TB, 1, H)
    var = jnp.mean(jnp.square(h - mean), axis=1, keepdims=True)
    h_bn = (h - mean) * lax.rsqrt(var + EPS)

    # Dice gate:  alpha*(1-x_n)*h + x_n*h  ==  h * (x_n + alpha*(1-x_n))
    alpha = p_ref[1:2, :]
    beta = p_ref[2:3, :]
    x_n = jax.nn.sigmoid(beta * h_bn)                           # EUP logistic
    h_act = h * (x_n + alpha * (1.0 - x_n))                     # (TB, N, H)

    # Linear2 (H -> 1) as VPU multiply + lane reduction (keeps the MXU free).
    w2_row = p_ref[3:4, :]                                      # (1, H)
    b2 = p_ref[4:5, 0:1]                                        # (1, 1)
    y = jnp.sum(h_act * w2_row, axis=2) + b2                    # (TB, N)

    out_ref[...] = y.astype(out_ref.dtype)


@functools.partial(jax.jit, static_argnames=("block_b",))
def activation_unit_batched(item1, item2, w1ac, w1b, small, *, block_b=128):
    """item1: (B, N, D1), item2: (B, N, D2). Returns y: (B, N) (module's (N,1) per pair)."""
    b, n, d1 = item1.shape
    _, _, d2 = item2.shape
    k, h_dim = w1ac.shape
    assert k == d1 + d2
    block_b = min(block_b, b)
    assert b % block_b == 0, "batch size must be a multiple of block_b"

    x12 = jnp.concatenate([item1, item2], axis=-1)              # (B, N, D1+D2)

    kernel = functools.partial(_activation_unit_kernel, d1=d1)
    return pl.pallas_call(
        kernel,
        out_shape=jax.ShapeDtypeStruct((b, n), jnp.float32),
        grid_spec=pltpu.PrefetchScalarGridSpec(
            num_scalar_prefetch=0,
            grid=(b // block_b,),
            in_specs=[
                pl.BlockSpec((block_b, n, k), lambda i: (i, 0, 0)),   # tiled pair data
                pl.BlockSpec((k, h_dim), lambda i: (0, 0)),           # resident weights
                pl.BlockSpec((n, h_dim), lambda i: (0, 0)),           # resident weights
                pl.BlockSpec((8, h_dim), lambda i: (0, 0)),           # packed small params
            ],
            out_specs=pl.BlockSpec((block_b, n), lambda i: (i, 0)),
        ),
        compiler_params=pltpu.CompilerParams(
            dimension_semantics=("parallel",),   # shard batch tiles across TCs (v7x)
        ),
    )(x12, w1ac, w1b, small)


def make_raw_params(key, n, d1, d2, hidden):
    """PyTorch-layout synthetic parameters (shapes match the module)."""
    in_size = d1 + n + d2  # Linear1 input = D1 + N (cross) + D2
    k1, k2, k3, k4, k5, k6 = jax.random.split(key, 6)
    w1 = jax.random.normal(k1, (in_size, hidden), jnp.float32) * 0.1
    b1 = jax.random.normal(k2, (1, hidden), jnp.float32) * 0.1
    w2 = jax.random.normal(k3, (hidden, 1), jnp.float32) * 0.1
    b2 = jax.random.normal(k4, (1, 1), jnp.float32) * 0.1
    # PyTorch's Dice initializes alpha/beta to zeros; use non-zero values here so the
    # BatchNorm / sigmoid gating path is actually exercised by the correctness check.
    alpha = jax.random.normal(k5, (1, hidden), jnp.float32) * 0.5
    beta = jax.random.normal(k6, (1, hidden), jnp.float32) * 0.5
    return {"w1": w1, "b1": b1, "w2": w2, "b2": b2, "alpha": alpha, "beta": beta}


def pack_params(raw, n, d1):
    """Pack PyTorch-layout params into the kernel's collapsed layout."""
    w1 = raw["w1"]
    h_dim = w1.shape[1]
    w1a, w1b, w1c = w1[:d1], w1[d1:d1 + n], w1[d1 + n:]
    w1ac = jnp.concatenate([w1a, w1c], axis=0)        # (D1+D2, H)
    small = jnp.zeros((8, h_dim), jnp.float32)
    small = small.at[0].set(raw["b1"].reshape(-1))
    small = small.at[1].set(raw["alpha"].reshape(-1))
    small = small.at[2].set(raw["beta"].reshape(-1))
    small = small.at[3].set(raw["w2"].reshape(-1))
    small = small.at[4, 0].set(raw["b2"][0, 0])
    return w1ac, w1b, small


def _reference(item1, item2, raw, n, d1):
    """Pure-JAX reference of the PyTorch forward, vectorized over the batch of pairs."""
    w1 = raw["w1"]
    w1a, w1b, w1c = w1[:d1], w1[d1:d1 + n], w1[d1 + n:]
    cross = jnp.einsum("bnd,bmd->bnm", item1, item2)
    h = (jnp.einsum("bnd,dh->bnh", item1, w1a)
         + jnp.einsum("bnm,mh->bnh", cross, w1b)
         + jnp.einsum("bnd,dh->bnh", item2, w1c)
         + raw["b1"])
    mean = jnp.mean(h, axis=1, keepdims=True)
    var = jnp.mean((h - mean) ** 2, axis=1, keepdims=True)
    h_bn = (h - mean) / jnp.sqrt(var + EPS)
    x_n = jax.nn.sigmoid(raw["beta"] * h_bn)
    h_act = raw["alpha"] * (1.0 - x_n) * h + x_n * h
    return jnp.sum(h_act * raw["w2"][:, 0], axis=-1) + raw["b2"][0, 0]


if __name__ == "__main__":
    # Small demo shapes: B pairs of (item1:(N,D1), item2:(N,D2)), hidden=36 (module default).
    B, N, D1, D2, HIDDEN = 64, 8, 16, 16, 36   # inSize = D1 + N + D2 = 40
    BLOCK_B = 16                                # 4 grid steps over the batch axis

    key = jax.random.PRNGKey(0)
    k_i1, k_i2, k_p = jax.random.split(key, 3)
    item1 = jax.random.normal(k_i1, (B, N, D1), jnp.float32)
    item2 = jax.random.normal(k_i2, (B, N, D2), jnp.float32)
    raw = make_raw_params(k_p, N, D1, D2, HIDDEN)
    w1ac, w1b, small = pack_params(raw, N, D1)

    out = activation_unit_batched(item1, item2, w1ac, w1b, small, block_b=BLOCK_B)
    out = jax.block_until_ready(out)

    ref = _reference(item1, item2, raw, N, D1)
    assert out.shape == (B, N)
    assert jnp.allclose(out, ref, atol=2e-4, rtol=2e-4), "mismatch vs reference"
    print("KERNEL_OK")
</pallas_src>

<mosaic_0001>
module attributes {stable_mosaic.version = 11 : i64} {
  func.func @_activation_unit_kernel(%arg0: i32, %arg1: memref<16x8x32xf32, #tpu.memory_space<vmem>>, %arg2: memref<32x36xf32, #tpu.memory_space<vmem>>, %arg3: memref<8x36xf32, #tpu.memory_space<vmem>>, %arg4: memref<8x36xf32, #tpu.memory_space<vmem>>, %arg5: memref<16x8xf32, #tpu.memory_space<vmem>>) attributes {dimension_semantics = [#tpu.dimension_semantics<parallel>], iteration_bounds = array<i64: 4>, scalar_prefetch = 0 : i64, scratch_operands = 0 : i64, tpu.core_type = #tpu.core_type<tc>, window_params = [{transform_indices = @transform_0, window_bounds = array<i64: 16, 8, 32>}, {pipeline_mode = #tpu.pipeline_mode<synchronous>, transform_indices = @transform_1, window_bounds = array<i64: 32, 36>}, {pipeline_mode = #tpu.pipeline_mode<synchronous>, transform_indices = @transform_2, window_bounds = array<i64: 8, 36>}, {pipeline_mode = #tpu.pipeline_mode<synchronous>, transform_indices = @transform_3, window_bounds = array<i64: 8, 36>}, {transform_indices = @transform_4, window_bounds = array<i64: 16, 8>}]} {
    %c0 = arith.constant 0 : index
    %c0_0 = arith.constant 0 : index
    %c0_1 = arith.constant 0 : index
    %0 = vector.load %arg1[%c0, %c0_0, %c0_1] : memref<16x8x32xf32, #tpu.memory_space<vmem>>, vector<16x8x32xf32>
    %1 = vector.extract_strided_slice %0 {offsets = [0, 0, 0], sizes = [16, 8, 16], strides = [1, 1, 1]} : vector<16x8x32xf32> to vector<16x8x16xf32>
    %2 = vector.extract_strided_slice %0 {offsets = [0, 0, 16], sizes = [16, 8, 16], strides = [1, 1, 1]} : vector<16x8x32xf32> to vector<16x8x16xf32>
    %cst = arith.constant dense<0.000000e+00> : vector<16x8x8xf32>
    %3 = tpu.matmul %1, %2, %cst {dimension_numbers = #tpu.dot_dimension_numbers<[2], [2], [1], [1], [0, 0, 0, 1, 1, 1], [0], [0]>} : vector<16x8x16xf32>, vector<16x8x16xf32>, vector<16x8x8xf32> -> vector<16x8x8xf32>
    %c0_2 = arith.constant 0 : index
    %c0_3 = arith.constant 0 : index
    %4 = vector.load %arg4[%c0_2, %c0_3] : memref<8x36xf32, #tpu.memory_space<vmem>>, vector<1x36xf32>
    %5 = vector.shape_cast %0 : vector<16x8x32xf32> to vector<128x32xf32>
    %c0_4 = arith.constant 0 : index
    %c0_5 = arith.constant 0 : index
    %6 = vector.load %arg2[%c0_4, %c0_5] : memref<32x36xf32, #tpu.memory_space<vmem>>, vector<32x36xf32>
    %cst_6 = arith.constant dense<0.000000e+00> : vector<128x36xf32>
    %7 = tpu.matmul %5, %6, %cst_6 {dimension_numbers = #tpu.dot_dimension_numbers<[1], [0], [0], [1], [0, 0, 1, 1], [], []>} : vector<128x32xf32>, vector<32x36xf32>, vector<128x36xf32> -> vector<128x36xf32>
    %8 = vector.shape_cast %3 : vector<16x8x8xf32> to vector<128x8xf32>
    %c0_7 = arith.constant 0 : index
    %c0_8 = arith.constant 0 : index
    %9 = vector.load %arg3[%c0_7, %c0_8] : memref<8x36xf32, #tpu.memory_space<vmem>>, vector<8x36xf32>
    %cst_9 = arith.constant dense<0.000000e+00> : vector<128x36xf32>
    %10 = tpu.matmul %8, %9, %cst_9 {dimension_numbers = #tpu.dot_dimension_numbers<[1], [0], [0], [1], [0, 0, 1, 1], [], []>} : vector<128x8xf32>, vector<8x36xf32>, vector<128x36xf32> -> vector<128x36xf32>
    %11 = arith.addf %7, %10 : vector<128x36xf32>
    %12 = vector.broadcast %4 : vector<1x36xf32> to vector<128x36xf32>
    %13 = arith.addf %11, %12 : vector<128x36xf32>
    %14 = vector.shape_cast %13 : vector<128x36xf32> to vector<16x8x36xf32>
    %cst_10 = arith.constant dense<0.000000e+00> : vector<16x36xf32>
    %15 = vector.multi_reduction <add>, %14, %cst_10 [1] : vector<16x8x36xf32> to vector<16x36xf32>
    %16 = vector.shape_cast %15 : vector<16x36xf32> to vector<16x1x36xf32>
    %cst_11 = arith.constant 8.000000e+00 : f32
    %17 = vector.broadcast %cst_11 : f32 to vector<16x1x36xf32>
    %18 = arith.divf %16, %17 : vector<16x1x36xf32>
    %19 = vector.broadcast %18 : vector<16x1x36xf32> to vector<16x8x36xf32>
    %20 = arith.subf %14, %19 : vector<16x8x36xf32>
    %21 = arith.mulf %20, %20 : vector<16x8x36xf32>
    %cst_12 = arith.constant dense<0.000000e+00> : vector<16x36xf32>
    %22 = vector.multi_reduction <add>, %21, %cst_12 [1] : vector<16x8x36xf32> to vector<16x36xf32>
    %23 = vector.shape_cast %22 : vector<16x36xf32> to vector<16x1x36xf32>
    %cst_13 = arith.constant 8.000000e+00 : f32
    %24 = vector.broadcast %cst_13 : f32 to vector<16x1x36xf32>
    %25 = arith.divf %23, %24 : vector<16x1x36xf32>
    %26 = vector.broadcast %18 : vector<16x1x36xf32> to vector<16x8x36xf32>
    %27 = arith.subf %14, %26 : vector<16x8x36xf32>
    %cst_14 = arith.constant 9.99999993E-9 : f32
    %28 = vector.broadcast %cst_14 : f32 to vector<16x1x36xf32>
    %29 = arith.addf %25, %28 : vector<16x1x36xf32>
    %30 = math.rsqrt %29 : vector<16x1x36xf32>
    %31 = vector.broadcast %30 : vector<16x1x36xf32> to vector<16x8x36xf32>
    %32 = arith.mulf %27, %31 : vector<16x8x36xf32>
    %c1 = arith.constant 1 : index
    %c0_15 = arith.constant 0 : index
    %33 = vector.load %arg4[%c1, %c0_15] : memref<8x36xf32, #tpu.memory_space<vmem>>, vector<1x36xf32>
    %c2 = arith.constant 2 : index
    %c0_16 = arith.constant 0 : index
    %34 = vector.load %arg4[%c2, %c0_16] : memref<8x36xf32, #tpu.memory_space<vmem>>, vector<1x36xf32>
    %35 = vector.shape_cast %34 : vector<1x36xf32> to vector<1x1x36xf32>
    %36 = vector.broadcast %35 : vector<1x1x36xf32> to vector<16x8x36xf32>
    %37 = arith.mulf %36, %32 : vector<16x8x36xf32>
    %38 = arith.negf %37 : vector<16x8x36xf32>
    %39 = math.exp %38 : vector<16x8x36xf32>
    %cst_17 = arith.constant 1.000000e+00 : f32
    %40 = vector.broadcast %cst_17 : f32 to vector<16x8x36xf32>
    %41 = arith.addf %40, %39 : vector<16x8x36xf32>
    %42 = arith.divf %40, %41 : vector<16x8x36xf32>
    %cst_18 = arith.constant 1.000000e+00 : f32
    %43 = vector.broadcast %cst_18 : f32 to vector<16x8x36xf32>
    %44 = arith.subf %43, %42 : vector<16x8x36xf32>
    %45 = vector.shape_cast %33 : vector<1x36xf32> to vector<1x1x36xf32>
    %46 = vector.broadcast %45 : vector<1x1x36xf32> to vector<16x8x36xf32>
    %47 = arith.mulf %46, %44 : vector<16x8x36xf32>
    %48 = arith.addf %42, %47 : vector<16x8x36xf32>
    %49 = arith.mulf %14, %48 : vector<16x8x36xf32>
    %c3 = arith.constant 3 : index
    %c0_19 = arith.constant 0 : index
    %50 = vector.load %arg4[%c3, %c0_19] : memref<8x36xf32, #tpu.memory_space<vmem>>, vector<1x36xf32>
    %c4 = arith.constant 4 : index
    %c0_20 = arith.constant 0 : index
    %51 = vector.load %arg4[%c4, %c0_20] : memref<8x36xf32, #tpu.memory_space<vmem>>, vector<1x1xf32>
    %52 = vector.shape_cast %50 : vector<1x36xf32> to vector<1x1x36xf32>
    %53 = vector.broadcast %52 : vector<1x1x36xf32> to vector<16x8x36xf32>
    %54 = arith.mulf %49, %53 : vector<16x8x36xf32>
    %cst_21 = arith.constant dense<0.000000e+00> : vector<16x8xf32>
    %55 = vector.multi_reduction <add>, %54, %cst_21 [2] : vector<16x8x36xf32> to vector<16x8xf32>
    %56 = vector.broadcast %51 : vector<1x1xf32> to vector<16x8xf32>
    %57 = arith.addf %55, %56 : vector<16x8xf32>
    %c0_22 = arith.constant 0 : index
    %c0_23 = arith.constant 0 : index
    %58 = vector.load %arg5[%c0_22, %c0_23] : memref<16x8xf32, #tpu.memory_space<vmem>>, vector<16x8xf32>
    tpu.vector_store %arg5[%c0_22, %c0_23], %57 {strides = array<i32>} : memref<16x8xf32, #tpu.memory_space<vmem>>, vector<16x8xf32>,
    return
  }
  func.func @transform_0(%arg0: i32) -> (i32, i32, i32) {
    %c0_i32 = arith.constant 0 : i32
    %c0_i32_0 = arith.constant 0 : i32
    %c0_i32_1 = arith.constant 0 : i32
    return %arg0, %c0_i32, %c0_i32_0 : i32, i32, i32
  }
  func.func @transform_1(%arg0: i32) -> (i32, i32) {
    %c0_i32 = arith.constant 0 : i32
    %c0_i32_0 = arith.constant 0 : i32
    %c0_i32_1 = arith.constant 0 : i32
    return %c0_i32, %c0_i32_0 : i32, i32
  }
  func.func @transform_2(%arg0: i32) -> (i32, i32) {
    %c0_i32 = arith.constant 0 : i32
    %c0_i32_0 = arith.constant 0 : i32
    %c0_i32_1 = arith.constant 0 : i32
    return %c0_i32, %c0_i32_0 : i32, i32
  }
  func.func @transform_3(%arg0: i32) -> (i32, i32) {
    %c0_i32 = arith.constant 0 : i32
    %c0_i32_0 = arith.constant 0 : i32
    %c0_i32_1 = arith.constant 0 : i32
    return %c0_i32, %c0_i32_0 : i32, i32
  }
  func.func @transform_4(%arg0: i32) -> (i32, i32) {
    %c0_i32 = arith.constant 0 : i32
    %c0_i32_0 = arith.constant 0 : i32
    return %arg0, %c0_i32 : i32, i32
  }
}

</mosaic_0001>

<llo_original>
// kernel: activation_unit_batched.1
$region0: #{activation_unit_batched.1}
  #allocation0 [shape = 'u32[]', space=smem, size = 0x4, offset = 0x4, fixed_abs, tag = 'smem constant byte address 0x4 - core index']
  #allocation1 [shape = 'u32[72,128]{1,0:T(1,128)}', space=vmem, size = 0x9000, scoped, tag = 'internal scratch']
  %s0 = inlined_call_operand.vmem [shape: f32[64,8,32], index: 0, kind: input, shape index: {}]
  %s1 = inlined_call_operand.vmem [shape: f32[32,36], index: 1, kind: input, shape index: {}]
  %s2 = inlined_call_operand.vmem [shape: f32[8,36], index: 2, kind: input, shape index: {}]
  %s3 = inlined_call_operand.vmem [shape: f32[8,36], index: 3, kind: input, shape index: {}]
  %s4 = inlined_call_operand.vmem [shape: f32[64,8], index: 4, kind: output, shape index: {}]
  %s5 = sld [smem:[#allocation0]]
  $region49: #{activation_unit_batched.1} parent=0
    _
  %s7 = ssub.s32 1, %s5
  %s8 = scalar_select 0, %s7, %s5
  loop: start=0, step=1, limit=6
  $region2: #{activation_unit_batched.1} parent=0 // loop_pre_header
    _
  $region3: #{activation_unit_batched.1} parent=0 // loop_header
    %s10 = sphi 0, %s14
    %p11 = scmp.ge.s32.totalorder %s10, 6
    %s20 = sphi 0, %s22
    %s23 = sphi 0, %s20
    %s24 = sphi 0, %s23
    %s40 = sphi 0, %s24
    %s44 = sphi 0, %s44
    %s46 = sphi 0, %s44
    %s47 = sphi 0, %s46
    %s61 = sphi 0, %s47
    %s65 = sphi 0, %s65
    %s67 = sphi 0, %s65
    %s68 = sphi 0, %s67
    %s82 = sphi 0, %s68
    %s86 = sphi 0, %s86
    %s88 = sphi 0, %s86
    %s89 = sphi 0, %s88
    %s103 = sphi 0, %s89
    %s109 = sphi 0, %s111
    %s112 = sphi 0, %s109
    %s113 = sphi 0, %s112
    %s129 = sphi 0, %s113
  $region4: #{activation_unit_batched.1} parent=0 // loop_header_branch
    %13 = sbr.rel (%p11) target = $region8
  $region5: #{activation_unit_batched.1} parent=0 // loop_body
    %s15 = ssub.s32 %s10, 1
    %s16 = ssub.s32 %s10, 2
    %s17 = sadd.s32 %s10, 1
    %s18 = ssub.s32 %s10, %s17
    %p19 = scmp.eq.s32.totalorder %s18, 0
    %s21 = sadd.s32 %s20, 1
    %s22 = scalar_select %p19, %s20, %s21
    %p25 = pneg %p19
    %p26 = scmp.eq.s32.totalorder %s10, 3
    %p27 = por %p25, %p26
    %p28 = scmp.ne.s32.totalorder %s20, %s23
    %p29 = scmp.eq.s32.totalorder %s10, 0
    %p30 = por %p28, %p29
    %p31 = scmp.ne.s32.totalorder %s20, %s23
    %p32 = scmp.eq.s32.totalorder %s15, 3
    %p33 = por %p31, %p32
    %p34 = scmp.ne.s32.totalorder %s23, %s24
    %p35 = scmp.eq.s32.totalorder %s15, 0
    %p36 = por %p34, %p35
    %p37 = scmp.ne.s32.totalorder %s23, %s24
    %p38 = scmp.eq.s32.totalorder %s16, 3
    %p39 = por %p37, %p38
    %p41 = scmp.ne.s32.totalorder %s24, %s40
    %p42 = scmp.eq.s32.totalorder %s16, 0
    %p43 = por %p41, %p42
    %s45 = sadd.s32 %s44, 1
    %p48 = scmp.eq.s32.totalorder %s10, 3
    %p49 = scmp.ne.s32.totalorder %s44, %s46
    %p50 = scmp.eq.s32.totalorder %s10, 0
    %p51 = por %p49, %p50
    %p52 = scmp.ne.s32.totalorder %s44, %s46
    %p53 = scmp.eq.s32.totalorder %s15, 3
    %p54 = por %p52, %p53
    %p55 = scmp.ne.s32.totalorder %s46, %s47
    %p56 = scmp.eq.s32.totalorder %s15, 0
    %p57 = por %p55, %p56
    %p58 = scmp.ne.s32.totalorder %s46, %s47
    %p59 = scmp.eq.s32.totalorder %s16, 3
    %p60 = por %p58, %p59
    %p62 = scmp.ne.s32.totalorder %s47, %s61
    %p63 = scmp.eq.s32.totalorder %s16, 0
    %p64 = por %p62, %p63
    %s66 = sadd.s32 %s65, 1
    %p69 = scmp.eq.s32.totalorder %s10, 3
    %p70 = scmp.ne.s32.totalorder %s65, %s67
    %p71 = scmp.eq.s32.totalorder %s10, 0
    %p72 = por %p70, %p71
    %p73 = scmp.ne.s32.totalorder %s65, %s67
    %p74 = scmp.eq.s32.totalorder %s15, 3
    %p75 = por %p73, %p74
    %p76 = scmp.ne.s32.totalorder %s67, %s68
    %p77 = scmp.eq.s32.totalorder %s15, 0
    %p78 = por %p76, %p77
    %p79 = scmp.ne.s32.totalorder %s67, %s68
    %p80 = scmp.eq.s32.totalorder %s16, 3
    %p81 = por %p79, %p80
    %p83 = scmp.ne.s32.totalorder %s68, %s82
    %p84 = scmp.eq.s32.totalorder %s16, 0
    %p85 = por %p83, %p84
    %s87 = sadd.s32 %s86, 1
    %p90 = scmp.eq.s32.totalorder %s10, 3
    %p91 = scmp.ne.s32.totalorder %s86, %s88
    %p92 = scmp.eq.s32.totalorder %s10, 0
    %p93 = por %p91, %p92
    %p94 = scmp.ne.s32.totalorder %s86, %s88
    %p95 = scmp.eq.s32.totalorder %s15, 3
    %p96 = por %p94, %p95
    %p97 = scmp.ne.s32.totalorder %s88, %s89
    %p98 = scmp.eq.s32.totalorder %s15, 0
    %p99 = por %p97, %p98
    %p100 = scmp.ne.s32.totalorder %s88, %s89
    %p101 = scmp.eq.s32.totalorder %s16, 3
    %p102 = por %p100, %p101
    %p104 = scmp.ne.s32.totalorder %s89, %s103
    %p105 = scmp.eq.s32.totalorder %s16, 0
    %p106 = por %p104, %p105
    %s107 = ssub.s32 %s10, %s17
    %p108 = scmp.eq.s32.totalorder %s107, 0
    %s110 = sadd.s32 %s109, 1
    %s111 = scalar_select %p108, %s109, %s110
    %p114 = pneg %p108
    %p115 = scmp.eq.s32.totalorder %s10, 3
    %p116 = por %p114, %p115
    %p117 = scmp.ne.s32.totalorder %s109, %s112
    %p118 = scmp.eq.s32.totalorder %s10, 0
    %p119 = por %p117, %p118
    %p120 = scmp.ne.s32.totalorder %s109, %s112
    %p121 = scmp.eq.s32.totalorder %s15, 3
    %p122 = por %p120, %p121
    %p123 = scmp.ne.s32.totalorder %s112, %s113
    %p124 = scmp.eq.s32.totalorder %s15, 0
    %p125 = por %p123, %p124
    %p126 = scmp.ne.s32.totalorder %s112, %s113
    %p127 = scmp.eq.s32.totalorder %s16, 3
    %p128 = por %p126, %p127
    %p130 = scmp.ne.s32.totalorder %s113, %s129
    %p131 = scmp.eq.s32.totalorder %s16, 0
    %p132 = por %p130, %p131
    %p133 = scmp.le.s32.totalorder 1, %s10
    %p134 = scmp.lt.s32.totalorder %s10, 5
    %p135 = pnand %p133, %p134
    %p136 = pneg %p135
    // Predicated region
    $region9: #{activation_unit_batched.1} parent=5 // pred_check
      _
    $region10: #{activation_unit_batched.1} parent=5 // pred_check_branch
      %138 = sbr.rel (%p135) target = $region12
    $region11: #{activation_unit_batched.1} parent=5 // pred_region
      %s139 = ssub.s32 %s10, 1
      // Predicated region
      $region13: #{activation_unit_batched.1} parent=11 // pred_check
        %p140 = pneg %p57
      $region14: #{activation_unit_batched.1} parent=11 // pred_check_branch
        %142 = sbr.rel (%p140) target = $region16
      $region15: #{activation_unit_batched.1} parent=11 // pred_region
        _
      $region16: #{activation_unit_batched.1} parent=11 // pred_fallthru
        _
      // Predicated region
      $region17: #{activation_unit_batched.1} parent=11 // pred_check
        %p143 = pneg %p78
      $region18: #{activation_unit_batched.1} parent=11 // pred_check_branch
        %145 = sbr.rel (%p143) target = $region20
      $region19: #{activation_unit_batched.1} parent=11 // pred_region
        _
      $region20: #{activation_unit_batched.1} parent=11 // pred_fallthru
        _
      // Predicated region
      $region21: #{activation_unit_batched.1} parent=11 // pred_check
        %p146 = pneg %p99
      $region22: #{activation_unit_batched.1} parent=11 // pred_check_branch
        %148 = sbr.rel (%p146) target = $region24
      $region23: #{activation_unit_batched.1} parent=11 // pred_region
        _
      $region24: #{activation_unit_batched.1} parent=11 // pred_fallthru
        _
    $region12: #{activation_unit_batched.1} parent=5 // pred_fallthru
      _
    %p149 = scmp.lt.s32.totalorder %s10, 4
    // Predicated region
    $region25: #{activation_unit_batched.1} parent=5 // pred_check
      %p150 = pneg %p149
    $region26: #{activation_unit_batched.1} parent=5 // pred_check_branch
      %152 = sbr.rel (%p150) target = $region28
    $region27: #{activation_unit_batched.1} parent=5 // pred_region
      // Predicated region
      $region29: #{activation_unit_batched.1} parent=27 // pred_check
        %p153 = pneg %p30
      $region30: #{activation_unit_batched.1} parent=27 // pred_check_branch
        %155 = sbr.rel (%p153) target = $region32
      $region31: #{activation_unit_batched.1} parent=27 // pred_region
        %s156 = smul.u32 16, %s10
        %p157 = scmp.lt.s32.totalorder %s156, 63
        %s158 = scalar_select %p157, %s156, 63
        %s159 = smul.addr %s158, 8
        %s160 = scalar_lea.vmem %s0, %s159
        %s161 = smul.u32 16, %s10
      $region32: #{activation_unit_batched.1} parent=27 // pred_fallthru
        _
    $region28: #{activation_unit_batched.1} parent=5 // pred_fallthru
      _
    %p162 = scmp.le.s32.totalorder 1, %s10
    %p163 = scmp.lt.s32.totalorder %s10, 5
    %p164 = pnand %p162, %p163
    %p165 = pneg %p164
    // Predicated region
    $region33: #{activation_unit_batched.1} parent=5 // pred_check
      _
    $region34: #{activation_unit_batched.1} parent=5 // pred_check_branch
      %167 = sbr.rel (%p164) target = $region36
    $region35: #{activation_unit_batched.1} parent=5 // pred_region
      %s168 = ssub.s32 %s10, 1
      %s169 = smul.u32 16, %s15
      %p170 = scmp.lt.s32.totalorder %s169, 63
      %s171 = scalar_select %p170, %s169, 63
      %s172 = smul.addr %s171, 8
      %s173 = scalar_lea.vmem %s0, %s172
      %p174 = pneg %p36
      %p175 = pneg %p33
      %p176 = pneg %p57
      %p177 = pneg %p54
      %p178 = pneg %p78
      %p179 = pneg %p75
      %p180 = pneg %p99
      %p181 = pneg %p96
      %p182 = pneg %p125
      %p183 = pneg %p122
      %s184 = smul.u32 2, %s15
      %p185 = scmp.lt.s32.totalorder %s184, 7
      %s186 = scalar_select %p185, %s184, 7
      %s187 = smul.addr %s186, 8
      %s188 = scalar_lea.vmem %s4, %s187
      %s189 = smul.u32 16, %s15
      %p190 = scmp.lt.s32.totalorder %s189, 63
      %s191 = scalar_select %p190, %s189, 63
      %s192 = smul.addr %s191, 8
      %s193 = scalar_lea.vmem %s0, %s192
      %s194 = smul.u32 16, %s15
      %s195 = smul.u32 2, %s15
      %p196 = scmp.lt.s32.totalorder %s195, 7
      %s197 = scalar_select %p196, %s195, 7
      %s198 = smul.addr %s197, 8
      %s199 = scalar_lea.vmem %s4, %s198
      %s200 = smul.u32 2, %s15
      %v201 = vld [vmem:[%s193] sm:$0xff]
      %v202 = vld [vmem:[%s193 + $0x8] sm:$0xff]
      %v203 = vld [vmem:[%s193 + $0x10] sm:$0xff]
      %v204 = vld [vmem:[%s193 + $0x18] sm:$0xff]
      %v205 = vld [vmem:[%s193 + $0x20] sm:$0xff]
      %v206 = vld [vmem:[%s193 + $0x28] sm:$0xff]
      %v207 = vld [vmem:[%s193 + $0x30] sm:$0xff]
      %v208 = vld [vmem:[%s193 + $0x38] sm:$0xff]
      %v209 = vld [vmem:[%s193 + $0x40] sm:$0xff]
      %v210 = vld [vmem:[%s193 + $0x48] sm:$0xff]
      %v211 = vld [vmem:[%s193 + $0x50] sm:$0xff]
      %v212 = vld [vmem:[%s193 + $0x58] sm:$0xff]
      %v213 = vld [vmem:[%s193 + $0x60] sm:$0xff]
      %v214 = vld [vmem:[%s193 + $0x68] sm:$0xff]
      %v215 = vld [vmem:[%s193 + $0x70] sm:$0xff]
      %v216 = vld [vmem:[%s193 + $0x78] sm:$0xff]
      %218 = vrot.lane.b32.xlu0 %v201, 112
      %v219 = vpop.permute.xlu0 %218
      %vm220 = vcmask 130048
      %v221 = vsel %vm220, %v201, 0
      %v223 = vsel %vm220, %v219, 0
      %225 = vmatpush.xpose.msra.mxu0 0.0
      %226 = vmatpush.xpose.msra.mxu0 0.0
      %227 = vmatpush.xpose.msra.mxu0 0.0
      %228 = vmatpush.xpose.msra.mxu0 0.0
      %229 = vmatpush.xpose.msra.mxu0 0.0
      %230 = vmatpush.xpose.msra.mxu0 0.0
      %231 = vmatpush.xpose.msra.mxu0 0.0
      %232 = vmatpush.xpose.msra.mxu0 0.0
      %233 = vmatpush.xpose.msra.mxu0 0.0
      %234 = vmatpush.xpose.msra.mxu0 0.0
      %235 = vmatpush.xpose.msra.mxu0 0.0
      %236 = vmatpush.xpose.msra.mxu0 0.0
      %237 = vmatpush.xpose.msra.mxu0 0.0
      %238 = vmatpush.xpose.msra.mxu0 0.0
      %239 = vmatpush.xpose.msra.mxu0 0.0
      %240 = vmatpush.xpose.msra.mxu0 %v223
      %241 = vmatmul.f32.gmra.mxu0 %v221
      %v242 = vpop.f32.mrf.mxu0
      %v243 = vadd.f32 0.0, %v242
      %244 = vdwg.mxu0
      %246 = vrot.lane.b32.xlu0 %v202, 112
      %v247 = vpop.permute.xlu0 %246
      %v248 = vsel %vm220, %v202, 0
      %v250 = vsel %vm220, %v247, 0
      %252 = vmatpush.xpose.msra.mxu0 0.0
      %253 = vmatpush.xpose.msra.mxu0 0.0
      %254 = vmatpush.xpose.msra.mxu0 0.0
      %255 = vmatpush.xpose.msra.mxu0 0.0
      %256 = vmatpush.xpose.msra.mxu0 0.0
      %257 = vmatpush.xpose.msra.mxu0 0.0
      %258 = vmatpush.xpose.msra.mxu0 0.0
      %259 = vmatpush.xpose.msra.mxu0 0.0
      %260 = vmatpush.xpose.msra.mxu0 0.0
      %261 = vmatpush.xpose.msra.mxu0 0.0
      %262 = vmatpush.xpose.msra.mxu0 0.0
      %263 = vmatpush.xpose.msra.mxu0 0.0
      %264 = vmatpush.xpose.msra.mxu0 0.0
      %265 = vmatpush.xpose.msra.mxu0 0.0
      %266 = vmatpush.xpose.msra.mxu0 0.0
      %267 = vmatpush.xpose.msra.mxu0 %v250
      %268 = vmatmul.f32.gmra.mxu0 %v248
      %v269 = vpop.f32.mrf.mxu0
      %v270 = vadd.f32 0.0, %v269
      %271 = vdwg.mxu0
      %273 = vrot.lane.b32.xlu0 %v203, 112
      %v274 = vpop.permute.xlu0 %273
      %v275 = vsel %vm220, %v203, 0
      %v277 = vsel %vm220, %v274, 0
      %279 = vmatpush.xpose.msra.mxu0 0.0
      %280 = vmatpush.xpose.msra.mxu0 0.0
      %281 = vmatpush.xpose.msra.mxu0 0.0
      %282 = vmatpush.xpose.msra.mxu0 0.0
      %283 = vmatpush.xpose.msra.mxu0 0.0
      %284 = vmatpush.xpose.msra.mxu0 0.0
      %285 = vmatpush.xpose.msra.mxu0 0.0
      %286 = vmatpush.xpose.msra.mxu0 0.0
      %287 = vmatpush.xpose.msra.mxu0 0.0
      %288 = vmatpush.xpose.msra.mxu0 0.0
      %289 = vmatpush.xpose.msra.mxu0 0.0
      %290 = vmatpush.xpose.msra.mxu0 0.0
      %291 = vmatpush.xpose.msra.mxu0 0.0
      %292 = vmatpush.xpose.msra.mxu0 0.0
      %293 = vmatpush.xpose.msra.mxu0 0.0
      %294 = vmatpush.xpose.msra.mxu0 %v277
      %295 = vmatmul.f32.gmra.mxu0 %v275
      %v296 = vpop.f32.mrf.mxu0
      %v297 = vadd.f32 0.0, %v296
      %298 = vdwg.mxu0
      %300 = vrot.lane.b32.xlu0 %v204, 112
      %v301 = vpop.permute.xlu0 %300
      %v302 = vsel %vm220, %v204, 0
      %v304 = vsel %vm220, %v301, 0
      %306 = vmatpush.xpose.msra.mxu0 0.0
      %307 = vmatpush.xpose.msra.mxu0 0.0
      %308 = vmatpush.xpose.msra.mxu0 0.0
      %309 = vmatpush.xpose.msra.mxu0 0.0
      %310 = vmatpush.xpose.msra.mxu0 0.0
      %311 = vmatpush.xpose.msra.mxu0 0.0
      %312 = vmatpush.xpose.msra.mxu0 0.0
      %313 = vmatpush.xpose.msra.mxu0 0.0
      %314 = vmatpush.xpose.msra.mxu0 0.0
      %315 = vmatpush.xpose.msra.mxu0 0.0
      %316 = vmatpush.xpose.msra.mxu0 0.0
      %317 = vmatpush.xpose.msra.mxu0 0.0
      %318 = vmatpush.xpose.msra.mxu0 0.0
      %319 = vmatpush.xpose.msra.mxu0 0.0
      %320 = vmatpush.xpose.msra.mxu0 0.0
      %321 = vmatpush.xpose.msra.mxu0 %v304
      %322 = vmatmul.f32.gmra.mxu0 %v302
      %v323 = vpop.f32.mrf.mxu0
      %v324 = vadd.f32 0.0, %v323
      %325 = vdwg.mxu0
      %327 = vrot.lane.b32.xlu0 %v205, 112
      %v328 = vpop.permute.xlu0 %327
      %v329 = vsel %vm220, %v205, 0
      %v331 = vsel %vm220, %v328, 0
      %333 = vmatpush.xpose.msra.mxu0 0.0
      %334 = vmatpush.xpose.msra.mxu0 0.0
      %335 = vmatpush.xpose.msra.mxu0 0.0
      %336 = vmatpush.xpose.msra.mxu0 0.0
      %337 = vmatpush.xpose.msra.mxu0 0.0
      %338 = vmatpush.xpose.msra.mxu0 0.0
      %339 = vmatpush.xpose.msra.mxu0 0.0
      %340 = vmatpush.xpose.msra.mxu0 0.0
      %341 = vmatpush.xpose.msra.mxu0 0.0
      %342 = vmatpush.xpose.msra.mxu0 0.0
      %343 = vmatpush.xpose.msra.mxu0 0.0
      %344 = vmatpush.xpose.msra.mxu0 0.0
      %345 = vmatpush.xpose.msra.mxu0 0.0
      %346 = vmatpush.xpose.msra.mxu0 0.0
      %347 = vmatpush.xpose.msra.mxu0 0.0
      %348 = vmatpush.xpose.msra.mxu0 %v331
      %349 = vmatmul.f32.gmra.mxu0 %v329
      %v350 = vpop.f32.mrf.mxu0
      %v351 = vadd.f32 0.0, %v350
      %352 = vdwg.mxu0
      %354 = vrot.lane.b32.xlu0 %v206, 112
      %v355 = vpop.permute.xlu0 %354
      %v356 = vsel %vm220, %v206, 0
      %v358 = vsel %vm220, %v355, 0
      %360 = vmatpush.xpose.msra.mxu0 0.0
      %361 = vmatpush.xpose.msra.mxu0 0.0
      %362 = vmatpush.xpose.msra.mxu0 0.0
      %363 = vmatpush.xpose.msra.mxu0 0.0
      %364 = vmatpush.xpose.msra.mxu0 0.0
      %365 = vmatpush.xpose.msra.mxu0 0.0
      %366 = vmatpush.xpose.msra.mxu0 0.0
      %367 = vmatpush.xpose.msra.mxu0 0.0
      %368 = vmatpush.xpose.msra.mxu0 0.0
      %369 = vmatpush.xpose.msra.mxu0 0.0
      %370 = vmatpush.xpose.msra.mxu0 0.0
      %371 = vmatpush.xpose.msra.mxu0 0.0
      %372 = vmatpush.xpose.msra.mxu0 0.0
      %373 = vmatpush.xpose.msra.mxu0 0.0
      %374 = vmatpush.xpose.msra.mxu0 0.0
      %375 = vmatpush.xpose.msra.mxu0 %v358
      %376 = vmatmul.f32.gmra.mxu0 %v356
      %v377 = vpop.f32.mrf.mxu0
      %v378 = vadd.f32 0.0, %v377
      %379 = vdwg.mxu0
      %381 = vrot.lane.b32.xlu0 %v207, 112
      %v382 = vpop.permute.xlu0 %381
      %v383 = vsel %vm220, %v207, 0
      %v385 = vsel %vm220, %v382, 0
      %387 = vmatpush.xpose.msra.mxu0 0.0
      %388 = vmatpush.xpose.msra.mxu0 0.0
      %389 = vmatpush.xpose.msra.mxu0 0.0
      %390 = vmatpush.xpose.msra.mxu0 0.0
      %391 = vmatpush.xpose.msra.mxu0 0.0
      %392 = vmatpush.xpose.msra.mxu0 0.0
      %393 = vmatpush.xpose.msra.mxu0 0.0
      %394 = vmatpush.xpose.msra.mxu0 0.0
      %395 = vmatpush.xpose.msra.mxu0 0.0
      %396 = vmatpush.xpose.msra.mxu0 0.0
      %397 = vmatpush.xpose.msra.mxu0 0.0
      %398 = vmatpush.xpose.msra.mxu0 0.0
      %399 = vmatpush.xpose.msra.mxu0 0.0
      %400 = vmatpush.xpose.msra.mxu0 0.0
      %401 = vmatpush.xpose.msra.mxu0 0.0
      %402 = vmatpush.xpose.msra.mxu0 %v385
      %403 = vmatmul.f32.gmra.mxu0 %v383
      %v404 = vpop.f32.mrf.mxu0
      %v405 = vadd.f32 0.0, %v404
      %406 = vdwg.mxu0
      %408 = vrot.lane.b32.xlu0 %v208, 112
      %v409 = vpop.permute.xlu0 %408
      %v410 = vsel %vm220, %v208, 0
      %v412 = vsel %vm220, %v409, 0
      %414 = vmatpush.xpose.msra.mxu0 0.0
      %415 = vmatpush.xpose.msra.mxu0 0.0
      %416 = vmatpush.xpose.msra.mxu0 0.0
      %417 = vmatpush.xpose.msra.mxu0 0.0
      %418 = vmatpush.xpose.msra.mxu0 0.0
      %419 = vmatpush.xpose.msra.mxu0 0.0
      %420 = vmatpush.xpose.msra.mxu0 0.0
      %421 = vmatpush.xpose.msra.mxu0 0.0
      %422 = vmatpush.xpose.msra.mxu0 0.0
      %423 = vmatpush.xpose.msra.mxu0 0.0
      %424 = vmatpush.xpose.msra.mxu0 0.0
      %425 = vmatpush.xpose.msra.mxu0 0.0
      %426 = vmatpush.xpose.msra.mxu0 0.0
      %427 = vmatpush.xpose.msra.mxu0 0.0
      %428 = vmatpush.xpose.msra.mxu0 0.0
      %429 = vmatpush.xpose.msra.mxu0 %v412
      %430 = vmatmul.f32.gmra.mxu0 %v410
      %v431 = vpop.f32.mrf.mxu0
      %v432 = vadd.f32 0.0, %v431
      %433 = vdwg.mxu0
      %435 = vrot.lane.b32.xlu0 %v209, 112
      %v436 = vpop.permute.xlu0 %435
      %v437 = vsel %vm220, %v209, 0
      %v439 = vsel %vm220, %v436, 0
      %441 = vmatpush.xpose.msra.mxu0 0.0
      %442 = vmatpush.xpose.msra.mxu0 0.0
      %443 = vmatpush.xpose.msra.mxu0 0.0
      %444 = vmatpush.xpose.msra.mxu0 0.0
      %445 = vmatpush.xpose.msra.mxu0 0.0
      %446 = vmatpush.xpose.msra.mxu0 0.0
      %447 = vmatpush.xpose.msra.mxu0 0.0
      %448 = vmatpush.xpose.msra.mxu0 0.0
      %449 = vmatpush.xpose.msra.mxu0 0.0
      %450 = vmatpush.xpose.msra.mxu0 0.0
      %451 = vmatpush.xpose.msra.mxu0 0.0
      %452 = vmatpush.xpose.msra.mxu0 0.0
      %453 = vmatpush.xpose.msra.mxu0 0.0
      %454 = vmatpush.xpose.msra.mxu0 0.0
      %455 = vmatpush.xpose.msra.mxu0 0.0
      %456 = vmatpush.xpose.msra.mxu0 %v439
      %457 = vmatmul.f32.gmra.mxu0 %v437
      %v458 = vpop.f32.mrf.mxu0
      %v459 = vadd.f32 0.0, %v458
      %460 = vdwg.mxu0
      %462 = vrot.lane.b32.xlu0 %v210, 112
      %v463 = vpop.permute.xlu0 %462
      %v464 = vsel %vm220, %v210, 0
      %v466 = vsel %vm220, %v463, 0
      %468 = vmatpush.xpose.msra.mxu0 0.0
      %469 = vmatpush.xpose.msra.mxu0 0.0
      %470 = vmatpush.xpose.msra.mxu0 0.0
      %471 = vmatpush.xpose.msra.mxu0 0.0
      %472 = vmatpush.xpose.msra.mxu0 0.0
      %473 = vmatpush.xpose.msra.mxu0 0.0
      %474 = vmatpush.xpose.msra.mxu0 0.0
      %475 = vmatpush.xpose.msra.mxu0 0.0
      %476 = vmatpush.xpose.msra.mxu0 0.0
      %477 = vmatpush.xpose.msra.mxu0 0.0
      %478 = vmatpush.xpose.msra.mxu0 0.0
      %479 = vmatpush.xpose.msra.mxu0 0.0
      %480 = vmatpush.xpose.msra.mxu0 0.0
      %481 = vmatpush.xpose.msra.mxu0 0.0
      %482 = vmatpush.xpose.msra.mxu0 0.0
      %483 = vmatpush.xpose.msra.mxu0 %v466
      %484 = vmatmul.f32.gmra.mxu0 %v464
      %v485 = vpop.f32.mrf.mxu0
      %v486 = vadd.f32 0.0, %v485
      %487 = vdwg.mxu0
      %489 = vrot.lane.b32.xlu0 %v211, 112
      %v490 = vpop.permute.xlu0 %489
      %v491 = vsel %vm220, %v211, 0
      %v493 = vsel %vm220, %v490, 0
      %495 = vmatpush.xpose.msra.mxu0 0.0
      %496 = vmatpush.xpose.msra.mxu0 0.0
      %497 = vmatpush.xpose.msra.mxu0 0.0
      %498 = vmatpush.xpose.msra.mxu0 0.0
      %499 = vmatpush.xpose.msra.mxu0 0.0
      %500 = vmatpush.xpose.msra.mxu0 0.0
      %501 = vmatpush.xpose.msra.mxu0 0.0
      %502 = vmatpush.xpose.msra.mxu0 0.0
      %503 = vmatpush.xpose.msra.mxu0 0.0
      %504 = vmatpush.xpose.msra.mxu0 0.0
      %505 = vmatpush.xpose.msra.mxu0 0.0
      %506 = vmatpush.xpose.msra.mxu0 0.0
      %507 = vmatpush.xpose.msra.mxu0 0.0
      %508 = vmatpush.xpose.msra.mxu0 0.0
      %509 = vmatpush.xpose.msra.mxu0 0.0
      %510 = vmatpush.xpose.msra.mxu0 %v493
      %511 = vmatmul.f32.gmra.mxu0 %v491
      %v512 = vpop.f32.mrf.mxu0
      %v513 = vadd.f32 0.0, %v512
      %514 = vdwg.mxu0
      %516 = vrot.lane.b32.xlu0 %v212, 112
      %v517 = vpop.permute.xlu0 %516
      %v518 = vsel %vm220, %v212, 0
      %v520 = vsel %vm220, %v517, 0
      %522 = vmatpush.xpose.msra.mxu0 0.0
      %523 = vmatpush.xpose.msra.mxu0 0.0
      %524 = vmatpush.xpose.msra.mxu0 0.0
      %525 = vmatpush.xpose.msra.mxu0 0.0
      %526 = vmatpush.xpose.msra.mxu0 0.0
      %527 = vmatpush.xpose.msra.mxu0 0.0
      %528 = vmatpush.xpose.msra.mxu0 0.0
      %529 = vmatpush.xpose.msra.mxu0 0.0
      %530 = vmatpush.xpose.msra.mxu0 0.0
      %531 = vmatpush.xpose.msra.mxu0 0.0
      %532 = vmatpush.xpose.msra.mxu0 0.0
      %533 = vmatpush.xpose.msra.mxu0 0.0
      %534 = vmatpush.xpose.msra.mxu0 0.0
      %535 = vmatpush.xpose.msra.mxu0 0.0
      %536 = vmatpush.xpose.msra.mxu0 0.0
      %537 = vmatpush.xpose.msra.mxu0 %v520
      %538 = vmatmul.f32.gmra.mxu0 %v518
      %v539 = vpop.f32.mrf.mxu0
      %v540 = vadd.f32 0.0, %v539
      %541 = vdwg.mxu0
      %543 = vrot.lane.b32.xlu0 %v213, 112
      %v544 = vpop.permute.xlu0 %543
      %v545 = vsel %vm220, %v213, 0
      %v547 = vsel %vm220, %v544, 0
      %549 = vmatpush.xpose.msra.mxu0 0.0
      %550 = vmatpush.xpose.msra.mxu0 0.0
      %551 = vmatpush.xpose.msra.mxu0 0.0
      %552 = vmatpush.xpose.msra.mxu0 0.0
      %553 = vmatpush.xpose.msra.mxu0 0.0
      %554 = vmatpush.xpose.msra.mxu0 0.0
      %555 = vmatpush.xpose.msra.mxu0 0.0
      %556 = vmatpush.xpose.msra.mxu0 0.0
      %557 = vmatpush.xpose.msra.mxu0 0.0
      %558 = vmatpush.xpose.msra.mxu0 0.0
      %559 = vmatpush.xpose.msra.mxu0 0.0
      %560 = vmatpush.xpose.msra.mxu0 0.0
      %561 = vmatpush.xpose.msra.mxu0 0.0
      %562 = vmatpush.xpose.msra.mxu0 0.0
      %563 = vmatpush.xpose.msra.mxu0 0.0
      %564 = vmatpush.xpose.msra.mxu0 %v547
      %565 = vmatmul.f32.gmra.mxu0 %v545
      %v566 = vpop.f32.mrf.mxu0
      %v567 = vadd.f32 0.0, %v566
      %568 = vdwg.mxu0
      %570 = vrot.lane.b32.xlu0 %v214, 112
      %v571 = vpop.permute.xlu0 %570
      %v572 = vsel %vm220, %v214, 0
      %v574 = vsel %vm220, %v571, 0
      %576 = vmatpush.xpose.msra.mxu0 0.0
      %577 = vmatpush.xpose.msra.mxu0 0.0
      %578 = vmatpush.xpose.msra.mxu0 0.0
      %579 = vmatpush.xpose.msra.mxu0 0.0
      %580 = vmatpush.xpose.msra.mxu0 0.0
      %581 = vmatpush.xpose.msra.mxu0 0.0
      %582 = vmatpush.xpose.msra.mxu0 0.0
      %583 = vmatpush.xpose.msra.mxu0 0.0
      %584 = vmatpush.xpose.msra.mxu0 0.0
      %585 = vmatpush.xpose.msra.mxu0 0.0
      %586 = vmatpush.xpose.msra.mxu0 0.0
      %587 = vmatpush.xpose.msra.mxu0 0.0
      %588 = vmatpush.xpose.msra.mxu0 0.0
      %589 = vmatpush.xpose.msra.mxu0 0.0
      %590 = vmatpush.xpose.msra.mxu0 0.0
      %591 = vmatpush.xpose.msra.mxu0 %v574
      %592 = vmatmul.f32.gmra.mxu0 %v572
      %v593 = vpop.f32.mrf.mxu0
      %v594 = vadd.f32 0.0, %v593
      %595 = vdwg.mxu0
      %597 = vrot.lane.b32.xlu0 %v215, 112
      %v598 = vpop.permute.xlu0 %597
      %v599 = vsel %vm220, %v215, 0
      %v601 = vsel %vm220, %v598, 0
      %603 = vmatpush.xpose.msra.mxu0 0.0
      %604 = vmatpush.xpose.msra.mxu0 0.0
      %605 = vmatpush.xpose.msra.mxu0 0.0
      %606 = vmatpush.xpose.msra.mxu0 0.0
      %607 = vmatpush.xpose.msra.mxu0 0.0
      %608 = vmatpush.xpose.msra.mxu0 0.0
      %609 = vmatpush.xpose.msra.mxu0 0.0
      %610 = vmatpush.xpose.msra.mxu0 0.0
      %611 = vmatpush.xpose.msra.mxu0 0.0
      %612 = vmatpush.xpose.msra.mxu0 0.0
      %613 = vmatpush.xpose.msra.mxu0 0.0
      %614 = vmatpush.xpose.msra.mxu0 0.0
      %615 = vmatpush.xpose.msra.mxu0 0.0
      %616 = vmatpush.xpose.msra.mxu0 0.0
      %617 = vmatpush.xpose.msra.mxu0 0.0
      %618 = vmatpush.xpose.msra.mxu0 %v601
      %619 = vmatmul.f32.gmra.mxu0 %v599
      %v620 = vpop.f32.mrf.mxu0
      %v621 = vadd.f32 0.0, %v620
      %622 = vdwg.mxu0
      %624 = vrot.lane.b32.xlu0 %v216, 112
      %v625 = vpop.permute.xlu0 %624
      %v626 = vsel %vm220, %v216, 0
      %v628 = vsel %vm220, %v625, 0
      %630 = vmatpush.xpose.msra.mxu0 0.0
      %631 = vmatpush.xpose.msra.mxu0 0.0
      %632 = vmatpush.xpose.msra.mxu0 0.0
      %633 = vmatpush.xpose.msra.mxu0 0.0
      %634 = vmatpush.xpose.msra.mxu0 0.0
      %635 = vmatpush.xpose.msra.mxu0 0.0
      %636 = vmatpush.xpose.msra.mxu0 0.0
      %637 = vmatpush.xpose.msra.mxu0 0.0
      %638 = vmatpush.xpose.msra.mxu0 0.0
      %639 = vmatpush.xpose.msra.mxu0 0.0
      %640 = vmatpush.xpose.msra.mxu0 0.0
      %641 = vmatpush.xpose.msra.mxu0 0.0
      %642 = vmatpush.xpose.msra.mxu0 0.0
      %643 = vmatpush.xpose.msra.mxu0 0.0
      %644 = vmatpush.xpose.msra.mxu0 0.0
      %645 = vmatpush.xpose.msra.mxu0 %v628
      %646 = vmatmul.f32.gmra.mxu0 %v626
      %v647 = vpop.f32.mrf.mxu0
      %v648 = vadd.f32 0.0, %v647
      %649 = vdwg.mxu0
      %v650 = vld [vmem:[%s3] sm:$0x1]
      %v651 = vld [vmem:[%s1] sm:$0xff]
      %v652 = vld [vmem:[%s1 + $0x8] sm:$0xff]
      %v653 = vld [vmem:[%s1 + $0x10] sm:$0xff]
      %v654 = vld [vmem:[%s1 + $0x18] sm:$0xff]
      %v655 = vld [vmem:[%s2] sm:$0xff]
      %vm656 = vcmask 64512
      %v658 = vsel %vm656, %v243, 0
      %v661 = vsel %vm656, %v270, 0
      %v664 = vsel %vm656, %v297, 0
      %v667 = vsel %vm656, %v324, 0
      %v670 = vsel %vm656, %v351, 0
      %v673 = vsel %vm656, %v378, 0
      %v676 = vsel %vm656, %v405, 0
      %v679 = vsel %vm656, %v432, 0
      %v682 = vsel %vm656, %v459, 0
      %v685 = vsel %vm656, %v486, 0
      %v688 = vsel %vm656, %v513, 0
      %v691 = vsel %vm656, %v540, 0
      %v694 = vsel %vm656, %v567, 0
      %v697 = vsel %vm656, %v594, 0
      %v700 = vsel %vm656, %v621, 0
      %v703 = vsel %vm656, %v648, 0
      %705 = vmatpush.msra.mxu0 0.0
      %706 = vmatpush.msra.mxu0 0.0
      %707 = vmatpush.msra.mxu0 0.0
      %708 = vmatpush.msra.mxu0 0.0
      %709 = vmatpush.msra.mxu0 0.0
      %710 = vmatpush.msra.mxu0 0.0
      %711 = vmatpush.msra.mxu0 0.0
      %712 = vmatpush.msra.mxu0 0.0
      %713 = vmatpush.msra.mxu0 0.0
      %714 = vmatpush.msra.mxu0 0.0
      %715 = vmatpush.msra.mxu0 0.0
      %716 = vmatpush.msra.mxu0 0.0
      %717 = vmatpush.msra.mxu0 0.0
      %718 = vmatpush.msra.mxu0 0.0
      %719 = vmatpush.msra.mxu0 0.0
      %720 = vmatpush.msra.mxu0 %v655
      %721 = vmatmul.f32.gmra.mxu0 %v658
      %v722 = vpop.f32.mrf.mxu0
      %v723 = vadd.f32 0.0, %v722
      %724 = vmatmul.f32.gmra.mxu0 %v661
      %v725 = vpop.f32.mrf.mxu0
      %v726 = vadd.f32 0.0, %v725
      %727 = vmatmul.f32.gmra.mxu0 %v664
      %v728 = vpop.f32.mrf.mxu0
      %v729 = vadd.f32 0.0, %v728
      %730 = vmatmul.f32.gmra.mxu0 %v667
      %v731 = vpop.f32.mrf.mxu0
      %v732 = vadd.f32 0.0, %v731
      %733 = vmatmul.f32.gmra.mxu0 %v670
      %v734 = vpop.f32.mrf.mxu0
      %v735 = vadd.f32 0.0, %v734
      %736 = vmatmul.f32.gmra.mxu0 %v673
      %v737 = vpop.f32.mrf.mxu0
      %v738 = vadd.f32 0.0, %v737
      %739 = vmatmul.f32.gmra.mxu0 %v676
      %v740 = vpop.f32.mrf.mxu0
      %v741 = vadd.f32 0.0, %v740
      %742 = vmatmul.f32.gmra.mxu0 %v679
      %v743 = vpop.f32.mrf.mxu0
      %v744 = vadd.f32 0.0, %v743
      %745 = vmatmul.f32.gmra.mxu0 %v682
      %v746 = vpop.f32.mrf.mxu0
      %v747 = vadd.f32 0.0, %v746
      %748 = vmatmul.f32.gmra.mxu0 %v685
      %v749 = vpop.f32.mrf.mxu0
      %v750 = vadd.f32 0.0, %v749
      %751 = vmatmul.f32.gmra.mxu0 %v688
      %v752 = vpop.f32.mrf.mxu0
      %v753 = vadd.f32 0.0, %v752
      %754 = vmatmul.f32.gmra.mxu0 %v691
      %v755 = vpop.f32.mrf.mxu0
      %v756 = vadd.f32 0.0, %v755
      %757 = vmatmul.f32.gmra.mxu0 %v694
      %v758 = vpop.f32.mrf.mxu0
      %v759 = vadd.f32 0.0, %v758
      %760 = vmatmul.f32.gmra.mxu0 %v697
      %v761 = vpop.f32.mrf.mxu0
      %v762 = vadd.f32 0.0, %v761
      %763 = vmatmul.f32.gmra.mxu0 %v700
      %v764 = vpop.f32.mrf.mxu0
      %v765 = vadd.f32 0.0, %v764
      %766 = vmatmul.f32.gmra.mxu0 %v703
      %v767 = vpop.f32.mrf.mxu0
      %v768 = vadd.f32 0.0, %v767
      %769 = vdwg.mxu0
      %vm770 = vcmask 261120
      %v771 = vsel %vm770, %v201, 0
      %v773 = vsel %vm770, %v202, 0
      %v775 = vsel %vm770, %v203, 0
      %v777 = vsel %vm770, %v204, 0
      %v779 = vsel %vm770, %v205, 0
      %v781 = vsel %vm770, %v206, 0
      %v783 = vsel %vm770, %v207, 0
      %v785 = vsel %vm770, %v208, 0
      %v787 = vsel %vm770, %v209, 0
      %v789 = vsel %vm770, %v210, 0
      %v791 = vsel %vm770, %v211, 0
      %v793 = vsel %vm770, %v212, 0
      %v795 = vsel %vm770, %v213, 0
      %v797 = vsel %vm770, %v214, 0
      %v799 = vsel %vm770, %v215, 0
      %v801 = vsel %vm770, %v216, 0
      %803 = vmatpush.msra.mxu0 0.0
      %804 = vmatpush.msra.mxu0 0.0
      %805 = vmatpush.msra.mxu0 0.0
      %806 = vmatpush.msra.mxu0 0.0
      %807 = vmatpush.msra.mxu0 0.0
      %808 = vmatpush.msra.mxu0 0.0
      %809 = vmatpush.msra.mxu0 0.0
      %810 = vmatpush.msra.mxu0 0.0
      %811 = vmatpush.msra.mxu0 0.0
      %812 = vmatpush.msra.mxu0 0.0
      %813 = vmatpush.msra.mxu0 0.0
      %814 = vmatpush.msra.mxu0 0.0
      %815 = vmatpush.msra.mxu0 %v654
      %816 = vmatpush.msra.mxu0 %v653
      %817 = vmatpush.msra.mxu0 %v652
      %818 = vmatpush.msra.mxu0 %v651
      %819 = vmatmul.f32.gmra.mxu0 %v771
      %v820 = vpop.f32.mrf.mxu0
      %v821 = vadd.f32 %v723, %v820
      %822 = vmatmul.f32.gmra.mxu0 %v773
      %v823 = vpop.f32.mrf.mxu0
      %v824 = vadd.f32 %v726, %v823
      %825 = vmatmul.f32.gmra.mxu0 %v775
      %v826 = vpop.f32.mrf.mxu0
      %v827 = vadd.f32 %v729, %v826
      %828 = vmatmul.f32.gmra.mxu0 %v777
      %v829 = vpop.f32.mrf.mxu0
      %v830 = vadd.f32 %v732, %v829
      %831 = vmatmul.f32.gmra.mxu0 %v779
      %v832 = vpop.f32.mrf.mxu0
      %v833 = vadd.f32 %v735, %v832
      %834 = vmatmul.f32.gmra.mxu0 %v781
      %v835 = vpop.f32.mrf.mxu0
      %v836 = vadd.f32 %v738, %v835
      %837 = vmatmul.f32.gmra.mxu0 %v783
      %v838 = vpop.f32.mrf.mxu0
      %v839 = vadd.f32 %v741, %v838
      %840 = vmatmul.f32.gmra.mxu0 %v785
      %v841 = vpop.f32.mrf.mxu0
      %v842 = vadd.f32 %v744, %v841
      %843 = vmatmul.f32.gmra.mxu0 %v787
      %v844 = vpop.f32.mrf.mxu0
      %v845 = vadd.f32 %v747, %v844
      %846 = vmatmul.f32.gmra.mxu0 %v789
      %v847 = vpop.f32.mrf.mxu0
      %v848 = vadd.f32 %v750, %v847
      %849 = vmatmul.f32.gmra.mxu0 %v791
      %v850 = vpop.f32.mrf.mxu0
      %v851 = vadd.f32 %v753, %v850
      %852 = vmatmul.f32.gmra.mxu0 %v793
      %v853 = vpop.f32.mrf.mxu0
      %v854 = vadd.f32 %v756, %v853
      %855 = vmatmul.f32.gmra.mxu0 %v795
      %v856 = vpop.f32.mrf.mxu0
      %v857 = vadd.f32 %v759, %v856
      %858 = vmatmul.f32.gmra.mxu0 %v797
      %v859 = vpop.f32.mrf.mxu0
      %v860 = vadd.f32 %v762, %v859
      %861 = vmatmul.f32.gmra.mxu0 %v799
      %v862 = vpop.f32.mrf.mxu0
      %v863 = vadd.f32 %v765, %v862
      %864 = vmatmul.f32.gmra.mxu0 %v801
      %v865 = vpop.f32.mrf.mxu0
      %v866 = vadd.f32 %v768, %v865
      %867 = vdwg.mxu0
      %v868 = vperm.slane %v650, 0
      %v869 = vadd.f32 %v821, %v868
      %v870 = vadd.f32 %v824, %v868
      %v871 = vadd.f32 %v827, %v868
      %v872 = vadd.f32 %v830, %v868
      %v873 = vadd.f32 %v833, %v868
      %v874 = vadd.f32 %v836, %v868
      %v875 = vadd.f32 %v839, %v868
      %v876 = vadd.f32 %v842, %v868
      %v877 = vadd.f32 %v845, %v868
      %v878 = vadd.f32 %v848, %v868
      %v879 = vadd.f32 %v851, %v868
      %v880 = vadd.f32 %v854, %v868
      %v881 = vadd.f32 %v857, %v868
      %v882 = vadd.f32 %v860, %v868
      %v883 = vadd.f32 %v863, %v868
      %v884 = vadd.f32 %v866, %v868
      %vm885 = vcmask 293888
      %v886 = vsel %vm885, %v869, 0.0
      %v887 = vrot.slane %v886, 4
      %v888 = vadd.f32 %v886, %v887
      %v889 = vrot.slane %v888, 2
      %v890 = vadd.f32 %v888, %v889
      %v891 = vrot.slane %v890, 1
      %v892 = vadd.f32 %v890, %v891
      %v893 = vsel %vm885, %v870, 0.0
      %v894 = vrot.slane %v893, 4
      %v895 = vadd.f32 %v893, %v894
      %v896 = vrot.slane %v895, 2
      %v897 = vadd.f32 %v895, %v896
      %v898 = vrot.slane %v897, 1
      %v899 = vadd.f32 %v897, %v898
      %v900 = vsel %vm885, %v871, 0.0
      %v901 = vrot.slane %v900, 4
      %v902 = vadd.f32 %v900, %v901
      %v903 = vrot.slane %v902, 2
      %v904 = vadd.f32 %v902, %v903
      %v905 = vrot.slane %v904, 1
      %v906 = vadd.f32 %v904, %v905
      %v907 = vsel %vm885, %v872, 0.0
      %v908 = vrot.slane %v907, 4
      %v909 = vadd.f32 %v907, %v908
      %v910 = vrot.slane %v909, 2
      %v911 = vadd.f32 %v909, %v910
      %v912 = vrot.slane %v911, 1
      %v913 = vadd.f32 %v911, %v912
      %v914 = vsel %vm885, %v873, 0.0
      %v915 = vrot.slane %v914, 4
      %v916 = vadd.f32 %v914, %v915
      %v917 = vrot.slane %v916, 2
      %v918 = vadd.f32 %v916, %v917
      %v919 = vrot.slane %v918, 1
      %v920 = vadd.f32 %v918, %v919
      %v921 = vsel %vm885, %v874, 0.0
      %v922 = vrot.slane %v921, 4
      %v923 = vadd.f32 %v921, %v922
      %v924 = vrot.slane %v923, 2
      %v925 = vadd.f32 %v923, %v924
      %v926 = vrot.slane %v925, 1
      %v927 = vadd.f32 %v925, %v926
      %v928 = vsel %vm885, %v875, 0.0
      %v929 = vrot.slane %v928, 4
      %v930 = vadd.f32 %v928, %v929
      %v931 = vrot.slane %v930, 2
      %v932 = vadd.f32 %v930, %v931
      %v933 = vrot.slane %v932, 1
      %v934 = vadd.f32 %v932, %v933
      %v935 = vsel %vm885, %v876, 0.0
      %v936 = vrot.slane %v935, 4
      %v937 = vadd.f32 %v935, %v936
      %v938 = vrot.slane %v937, 2
      %v939 = vadd.f32 %v937, %v938
      %v940 = vrot.slane %v939, 1
      %v941 = vadd.f32 %v939, %v940
      %v942 = vsel %vm885, %v877, 0.0
      %v943 = vrot.slane %v942, 4
      %v944 = vadd.f32 %v942, %v943
      %v945 = vrot.slane %v944, 2
      %v946 = vadd.f32 %v944, %v945
      %v947 = vrot.slane %v946, 1
      %v948 = vadd.f32 %v946, %v947
      %v949 = vsel %vm885, %v878, 0.0
      %v950 = vrot.slane %v949, 4
      %v951 = vadd.f32 %v949, %v950
      %v952 = vrot.slane %v951, 2
      %v953 = vadd.f32 %v951, %v952
      %v954 = vrot.slane %v953, 1
      %v955 = vadd.f32 %v953, %v954
      %v956 = vsel %vm885, %v879, 0.0
      %v957 = vrot.slane %v956, 4
      %v958 = vadd.f32 %v956, %v957
      %v959 = vrot.slane %v958, 2
      %v960 = vadd.f32 %v958, %v959
      %v961 = vrot.slane %v960, 1
      %v962 = vadd.f32 %v960, %v961
      %v963 = vsel %vm885, %v880, 0.0
      %v964 = vrot.slane %v963, 4
      %v965 = vadd.f32 %v963, %v964
      %v966 = vrot.slane %v965, 2
      %v967 = vadd.f32 %v965, %v966
      %v968 = vrot.slane %v967, 1
      %v969 = vadd.f32 %v967, %v968
      %v970 = vsel %vm885, %v881, 0.0
      %v971 = vrot.slane %v970, 4
      %v972 = vadd.f32 %v970, %v971
      %v973 = vrot.slane %v972, 2
      %v974 = vadd.f32 %v972, %v973
      %v975 = vrot.slane %v974, 1
      %v976 = vadd.f32 %v974, %v975
      %v977 = vsel %vm885, %v882, 0.0
      %v978 = vrot.slane %v977, 4
      %v979 = vadd.f32 %v977, %v978
      %v980 = vrot.slane %v979, 2
      %v981 = vadd.f32 %v979, %v980
      %v982 = vrot.slane %v981, 1
      %v983 = vadd.f32 %v981, %v982
      %v984 = vsel %vm885, %v883, 0.0
      %v985 = vrot.slane %v984, 4
      %v986 = vadd.f32 %v984, %v985
      %v987 = vrot.slane %v986, 2
      %v988 = vadd.f32 %v986, %v987
      %v989 = vrot.slane %v988, 1
      %v990 = vadd.f32 %v988, %v989
      %v991 = vsel %vm885, %v884, 0.0
      %v992 = vrot.slane %v991, 4
      %v993 = vadd.f32 %v991, %v992
      %v994 = vrot.slane %v993, 2
      %v995 = vadd.f32 %v993, %v994
      %v996 = vrot.slane %v995, 1
      %v997 = vadd.f32 %v995, %v996
      %v998 = vrcp.pop 8.0
      %v999 = vmul.f32 8.0, %v998
      %v1000 = vsub.f32 1.0, %v999
      %v1001 = vmul.f32 %v998, %v1000
      %v1002 = vadd.f32 %v998, %v1001
      %vm1003 = vweird.f32 %v998
      %v1004 = vsel %vm1003, %v998, %v1002
      %v1005 = vmul.f32 %v892, %v1004
      %v1006 = vmul.f32 %v899, %v1004
      %v1007 = vmul.f32 %v906, %v1004
      %v1008 = vmul.f32 %v913, %v1004
      %v1009 = vmul.f32 %v920, %v1004
      %v1010 = vmul.f32 %v927, %v1004
      %v1011 = vmul.f32 %v934, %v1004
      %v1012 = vmul.f32 %v941, %v1004
      %v1013 = vmul.f32 %v948, %v1004
      %v1014 = vmul.f32 %v955, %v1004
      %v1015 = vmul.f32 %v962, %v1004
      %v1016 = vmul.f32 %v969, %v1004
      %v1017 = vmul.f32 %v976, %v1004
      %v1018 = vmul.f32 %v983, %v1004
      %v1019 = vmul.f32 %v990, %v1004
      %v1020 = vmul.f32 %v997, %v1004
      %v1021 = vsub.f32 %v869, %v1005
      %v1022 = vsub.f32 %v870, %v1006
      %v1023 = vsub.f32 %v871, %v1007
      %v1024 = vsub.f32 %v872, %v1008
      %v1025 = vsub.f32 %v873, %v1009
      %v1026 = vsub.f32 %v874, %v1010
      %v1027 = vsub.f32 %v875, %v1011
      %v1028 = vsub.f32 %v876, %v1012
      %v1029 = vsub.f32 %v877, %v1013
      %v1030 = vsub.f32 %v878, %v1014
      %v1031 = vsub.f32 %v879, %v1015
      %v1032 = vsub.f32 %v880, %v1016
      %v1033 = vsub.f32 %v881, %v1017
      %v1034 = vsub.f32 %v882, %v1018
      %v1035 = vsub.f32 %v883, %v1019
      %v1036 = vsub.f32 %v884, %v1020
      %v1037 = vmul.f32 %v1021, %v1021
      %v1038 = vmul.f32 %v1022, %v1022
      %v1039 = vmul.f32 %v1023, %v1023
      %v1040 = vmul.f32 %v1024, %v1024
      %v1041 = vmul.f32 %v1025, %v1025
      %v1042 = vmul.f32 %v1026, %v1026
      %v1043 = vmul.f32 %v1027, %v1027
      %v1044 = vmul.f32 %v1028, %v1028
      %v1045 = vmul.f32 %v1029, %v1029
      %v1046 = vmul.f32 %v1030, %v1030
      %v1047 = vmul.f32 %v1031, %v1031
      %v1048 = vmul.f32 %v1032, %v1032
      %v1049 = vmul.f32 %v1033, %v1033
      %v1050 = vmul.f32 %v1034, %v1034
      %v1051 = vmul.f32 %v1035, %v1035
      %v1052 = vmul.f32 %v1036, %v1036
      %v1053 = vsel %vm885, %v1037, 0.0
      %v1054 = vrot.slane %v1053, 4
      %v1055 = vadd.f32 %v1053, %v1054
      %v1056 = vrot.slane %v1055, 2
      %v1057 = vadd.f32 %v1055, %v1056
      %v1058 = vrot.slane %v1057, 1
      %v1059 = vadd.f32 %v1057, %v1058
      %v1060 = vsel %vm885, %v1038, 0.0
      %v1061 = vrot.slane %v1060, 4
      %v1062 = vadd.f32 %v1060, %v1061
      %v1063 = vrot.slane %v1062, 2
      %v1064 = vadd.f32 %v1062, %v1063
      %v1065 = vrot.slane %v1064, 1
      %v1066 = vadd.f32 %v1064, %v1065
      %v1067 = vsel %vm885, %v1039, 0.0
      %v1068 = vrot.slane %v1067, 4
      %v1069 = vadd.f32 %v1067, %v1068
      %v1070 = vrot.slane %v1069, 2
      %v1071 = vadd.f32 %v1069, %v1070
      %v1072 = vrot.slane %v1071, 1
      %v1073 = vadd.f32 %v1071, %v1072
      %v1074 = vsel %vm885, %v1040, 0.0
      %v1075 = vrot.slane %v1074, 4
      %v1076 = vadd.f32 %v1074, %v1075
      %v1077 = vrot.slane %v1076, 2
      %v1078 = vadd.f32 %v1076, %v1077
      %v1079 = vrot.slane %v1078, 1
      %v1080 = vadd.f32 %v1078, %v1079
      %v1081 = vsel %vm885, %v1041, 0.0
      %v1082 = vrot.slane %v1081, 4
      %v1083 = vadd.f32 %v1081, %v1082
      %v1084 = vrot.slane %v1083, 2
      %v1085 = vadd.f32 %v1083, %v1084
      %v1086 = vrot.slane %v1085, 1
      %v1087 = vadd.f32 %v1085, %v1086
      %v1088 = vsel %vm885, %v1042, 0.0
      %v1089 = vrot.slane %v1088, 4
      %v1090 = vadd.f32 %v1088, %v1089
      %v1091 = vrot.slane %v1090, 2
      %v1092 = vadd.f32 %v1090, %v1091
      %v1093 = vrot.slane %v1092, 1
      %v1094 = vadd.f32 %v1092, %v1093
      %v1095 = vsel %vm885, %v1043, 0.0
      %v1096 = vrot.slane %v1095, 4
      %v1097 = vadd.f32 %v1095, %v1096
      %v1098 = vrot.slane %v1097, 2
      %v1099 = vadd.f32 %v1097, %v1098
      %v1100 = vrot.slane %v1099, 1
      %v1101 = vadd.f32 %v1099, %v1100
      %v1102 = vsel %vm885, %v1044, 0.0
      %v1103 = vrot.slane %v1102, 4
      %v1104 = vadd.f32 %v1102, %v1103
      %v1105 = vrot.slane %v1104, 2
      %v1106 = vadd.f32 %v1104, %v1105
      %v1107 = vrot.slane %v1106, 1
      %v1108 = vadd.f32 %v1106, %v1107
      %v1109 = vsel %vm885, %v1045, 0.0
      %v1110 = vrot.slane %v1109, 4
      %v1111 = vadd.f32 %v1109, %v1110
      %v1112 = vrot.slane %v1111, 2
      %v1113 = vadd.f32 %v1111, %v1112
      %v1114 = vrot.slane %v1113, 1
      %v1115 = vadd.f32 %v1113, %v1114
      %v1116 = vsel %vm885, %v1046, 0.0
      %v1117 = vrot.slane %v1116, 4
      %v1118 = vadd.f32 %v1116, %v1117
      %v1119 = vrot.slane %v1118, 2
      %v1120 = vadd.f32 %v1118, %v1119
      %v1121 = vrot.slane %v1120, 1
      %v1122 = vadd.f32 %v1120, %v1121
      %v1123 = vsel %vm885, %v1047, 0.0
      %v1124 = vrot.slane %v1123, 4
      %v1125 = vadd.f32 %v1123, %v1124
      %v1126 = vrot.slane %v1125, 2
      %v1127 = vadd.f32 %v1125, %v1126
      %v1128 = vrot.slane %v1127, 1
      %v1129 = vadd.f32 %v1127, %v1128
      %v1130 = vsel %vm885, %v1048, 0.0
      %v1131 = vrot.slane %v1130, 4
      %v1132 = vadd.f32 %v1130, %v1131
      %v1133 = vrot.slane %v1132, 2
      %v1134 = vadd.f32 %v1132, %v1133
      %v1135 = vrot.slane %v1134, 1
      %v1136 = vadd.f32 %v1134, %v1135
      %v1137 = vsel %vm885, %v1049, 0.0
      %v1138 = vrot.slane %v1137, 4
      %v1139 = vadd.f32 %v1137, %v1138
      %v1140 = vrot.slane %v1139, 2
      %v1141 = vadd.f32 %v1139, %v1140
      %v1142 = vrot.slane %v1141, 1
      %v1143 = vadd.f32 %v1141, %v1142
      %v1144 = vsel %vm885, %v1050, 0.0
      %v1145 = vrot.slane %v1144, 4
      %v1146 = vadd.f32 %v1144, %v1145
      %v1147 = vrot.slane %v1146, 2
      %v1148 = vadd.f32 %v1146, %v1147
      %v1149 = vrot.slane %v1148, 1
      %v1150 = vadd.f32 %v1148, %v1149
      %v1151 = vsel %vm885, %v1051, 0.0
      %v1152 = vrot.slane %v1151, 4
      %v1153 = vadd.f32 %v1151, %v1152
      %v1154 = vrot.slane %v1153, 2
      %v1155 = vadd.f32 %v1153, %v1154
      %v1156 = vrot.slane %v1155, 1
      %v1157 = vadd.f32 %v1155, %v1156
      %v1158 = vsel %vm885, %v1052, 0.0
      %v1159 = vrot.slane %v1158, 4
      %v1160 = vadd.f32 %v1158, %v1159
      %v1161 = vrot.slane %v1160, 2
      %v1162 = vadd.f32 %v1160, %v1161
      %v1163 = vrot.slane %v1162, 1
      %v1164 = vadd.f32 %v1162, %v1163
      %v1165 = vmul.f32 %v1059, %v1004
      %v1166 = vmul.f32 %v1066, %v1004
      %v1167 = vmul.f32 %v1073, %v1004
      %v1168 = vmul.f32 %v1080, %v1004
      %v1169 = vmul.f32 %v1087, %v1004
      %v1170 = vmul.f32 %v1094, %v1004
      %v1171 = vmul.f32 %v1101, %v1004
      %v1172 = vmul.f32 %v1108, %v1004
      %v1173 = vmul.f32 %v1115, %v1004
      %v1174 = vmul.f32 %v1122, %v1004
      %v1175 = vmul.f32 %v1129, %v1004
      %v1176 = vmul.f32 %v1136, %v1004
      %v1177 = vmul.f32 %v1143, %v1004
      %v1178 = vmul.f32 %v1150, %v1004
      %v1179 = vmul.f32 %v1157, %v1004
      %v1180 = vmul.f32 %v1164, %v1004
      %v1181 = vadd.f32 %v1165, 1e-08
      %v1182 = vadd.f32 %v1166, 1e-08
      %v1183 = vadd.f32 %v1167, 1e-08
      %v1184 = vadd.f32 %v1168, 1e-08
      %v1185 = vadd.f32 %v1169, 1e-08
      %v1186 = vadd.f32 %v1170, 1e-08
      %v1187 = vadd.f32 %v1171, 1e-08
      %v1188 = vadd.f32 %v1172, 1e-08
      %v1189 = vadd.f32 %v1173, 1e-08
      %v1190 = vadd.f32 %v1174, 1e-08
      %v1191 = vadd.f32 %v1175, 1e-08
      %v1192 = vadd.f32 %v1176, 1e-08
      %v1193 = vadd.f32 %v1177, 1e-08
      %v1194 = vadd.f32 %v1178, 1e-08
      %v1195 = vadd.f32 %v1179, 1e-08
      %v1196 = vadd.f32 %v1180, 1e-08
      %v1197 = vrsqrt.pop %v1181
      %v1198 = vmul.f32 %v1197, %v1181
      %v1199 = vmul.f32 %v1198, %v1197
      %v1200 = vmul.f32 0.5, %v1199
      %v1201 = vsub.f32 1.5, %v1200
      %v1202 = vmul.f32 %v1197, %v1201
      %vm1203 = vweird.f32 %v1181
      %vm1204 = vweird.f32 %v1197
      %vm1205 = vmor %vm1203, %vm1204
      %v1206 = vsel %vm1205, %v1197, %v1202
      %v1207 = vrsqrt.pop %v1182
      %v1208 = vmul.f32 %v1207, %v1182
      %v1209 = vmul.f32 %v1208, %v1207
      %v1210 = vmul.f32 0.5, %v1209
      %v1211 = vsub.f32 1.5, %v1210
      %v1212 = vmul.f32 %v1207, %v1211
      %vm1213 = vweird.f32 %v1182
      %vm1214 = vweird.f32 %v1207
      %vm1215 = vmor %vm1213, %vm1214
      %v1216 = vsel %vm1215, %v1207, %v1212
      %v1217 = vrsqrt.pop %v1183
      %v1218 = vmul.f32 %v1217, %v1183
      %v1219 = vmul.f32 %v1218, %v1217
      %v1220 = vmul.f32 0.5, %v1219
      %v1221 = vsub.f32 1.5, %v1220
      %v1222 = vmul.f32 %v1217, %v1221
      %vm1223 = vweird.f32 %v1183
      %vm1224 = vweird.f32 %v1217
      %vm1225 = vmor %vm1223, %vm1224
      %v1226 = vsel %vm1225, %v1217, %v1222
      %v1227 = vrsqrt.pop %v1184
      %v1228 = vmul.f32 %v1227, %v1184
      %v1229 = vmul.f32 %v1228, %v1227
      %v1230 = vmul.f32 0.5, %v1229
      %v1231 = vsub.f32 1.5, %v1230
      %v1232 = vmul.f32 %v1227, %v1231
      %vm1233 = vweird.f32 %v1184
      %vm1234 = vweird.f32 %v1227
      %vm1235 = vmor %vm1233, %vm1234
      %v1236 = vsel %vm1235, %v1227, %v1232
      %v1237 = vrsqrt.pop %v1185
      %v1238 = vmul.f32 %v1237, %v1185
      %v1239 = vmul.f32 %v1238, %v1237
      %v1240 = vmul.f32 0.5, %v1239
      %v1241 = vsub.f32 1.5, %v1240
      %v1242 = vmul.f32 %v1237, %v1241
      %vm1243 = vweird.f32 %v1185
      %vm1244 = vweird.f32 %v1237
      %vm1245 = vmor %vm1243, %vm1244
      %v1246 = vsel %vm1245, %v1237, %v1242
      %v1247 = vrsqrt.pop %v1186
      %v1248 = vmul.f32 %v1247, %v1186
      %v1249 = vmul.f32 %v1248, %v1247
      %v1250 = vmul.f32 0.5, %v1249
      %v1251 = vsub.f32 1.5, %v1250
      %v1252 = vmul.f32 %v1247, %v1251
      %vm1253 = vweird.f32 %v1186
      %vm1254 = vweird.f32 %v1247
      %vm1255 = vmor %vm1253, %vm1254
      %v1256 = vsel %vm1255, %v1247, %v1252
      %v1257 = vrsqrt.pop %v1187
      %v1258 = vmul.f32 %v1257, %v1187
      %v1259 = vmul.f32 %v1258, %v1257
      %v1260 = vmul.f32 0.5, %v1259
      %v1261 = vsub.f32 1.5, %v1260
      %v1262 = vmul.f32 %v1257, %v1261
      %vm1263 = vweird.f32 %v1187
      %vm1264 = vweird.f32 %v1257
      %vm1265 = vmor %vm1263, %vm1264
      %v1266 = vsel %vm1265, %v1257, %v1262
      %v1267 = vrsqrt.pop %v1188
      %v1268 = vmul.f32 %v1267, %v1188
      %v1269 = vmul.f32 %v1268, %v1267
      %v1270 = vmul.f32 0.5, %v1269
      %v1271 = vsub.f32 1.5, %v1270
      %v1272 = vmul.f32 %v1267, %v1271
      %vm1273 = vweird.f32 %v1188
      %vm1274 = vweird.f32 %v1267
      %vm1275 = vmor %vm1273, %vm1274
      %v1276 = vsel %vm1275, %v1267, %v1272
      %v1277 = vrsqrt.pop %v1189
      %v1278 = vmul.f32 %v1277, %v1189
      %v1279 = vmul.f32 %v1278, %v1277
      %v1280 = vmul.f32 0.5, %v1279
      %v1281 = vsub.f32 1.5, %v1280
      %v1282 = vmul.f32 %v1277, %v1281
      %vm1283 = vweird.f32 %v1189
      %vm1284 = vweird.f32 %v1277
      %vm1285 = vmor %vm1283, %vm1284
      %v1286 = vsel %vm1285, %v1277, %v1282
      %v1287 = vrsqrt.pop %v1190
      %v1288 = vmul.f32 %v1287, %v1190
      %v1289 = vmul.f32 %v1288, %v1287
      %v1290 = vmul.f32 0.5, %v1289
      %v1291 = vsub.f32 1.5, %v1290
      %v1292 = vmul.f32 %v1287, %v1291
      %vm1293 = vweird.f32 %v1190
      %vm1294 = vweird.f32 %v1287
      %vm1295 = vmor %vm1293, %vm1294
      %v1296 = vsel %vm1295, %v1287, %v1292
      %v1297 = vrsqrt.pop %v1191
      %v1298 = vmul.f32 %v1297, %v1191
      %v1299 = vmul.f32 %v1298, %v1297
      %v1300 = vmul.f32 0.5, %v1299
      %v1301 = vsub.f32 1.5, %v1300
      %v1302 = vmul.f32 %v1297, %v1301
      %vm1303 = vweird.f32 %v1191
      %vm1304 = vweird.f32 %v1297
      %vm1305 = vmor %vm1303, %vm1304
      %v1306 = vsel %vm1305, %v1297, %v1302
      %v1307 = vrsqrt.pop %v1192
      %v1308 = vmul.f32 %v1307, %v1192
      %v1309 = vmul.f32 %v1308, %v1307
      %v1310 = vmul.f32 0.5, %v1309
      %v1311 = vsub.f32 1.5, %v1310
      %v1312 = vmul.f32 %v1307, %v1311
      %vm1313 = vweird.f32 %v1192
      %vm1314 = vweird.f32 %v1307
      %vm1315 = vmor %vm1313, %vm1314
      %v1316 = vsel %vm1315, %v1307, %v1312
      %v1317 = vrsqrt.pop %v1193
      %v1318 = vmul.f32 %v1317, %v1193
      %v1319 = vmul.f32 %v1318, %v1317
      %v1320 = vmul.f32 0.5, %v1319
      %v1321 = vsub.f32 1.5, %v1320
      %v1322 = vmul.f32 %v1317, %v1321
      %vm1323 = vweird.f32 %v1193
      %vm1324 = vweird.f32 %v1317
      %vm1325 = vmor %vm1323, %vm1324
      %v1326 = vsel %vm1325, %v1317, %v1322
      %v1327 = vrsqrt.pop %v1194
      %v1328 = vmul.f32 %v1327, %v1194
      %v1329 = vmul.f32 %v1328, %v1327
      %v1330 = vmul.f32 0.5, %v1329
      %v1331 = vsub.f32 1.5, %v1330
      %v1332 = vmul.f32 %v1327, %v1331
      %vm1333 = vweird.f32 %v1194
      %vm1334 = vweird.f32 %v1327
      %vm1335 = vmor %vm1333, %vm1334
      %v1336 = vsel %vm1335, %v1327, %v1332
      %v1337 = vrsqrt.pop %v1195
      %v1338 = vmul.f32 %v1337, %v1195
      %v1339 = vmul.f32 %v1338, %v1337
      %v1340 = vmul.f32 0.5, %v1339
      %v1341 = vsub.f32 1.5, %v1340
      %v1342 = vmul.f32 %v1337, %v1341
      %vm1343 = vweird.f32 %v1195
      %vm1344 = vweird.f32 %v1337
      %vm1345 = vmor %vm1343, %vm1344
      %v1346 = vsel %vm1345, %v1337, %v1342
      %v1347 = vrsqrt.pop %v1196
      %v1348 = vmul.f32 %v1347, %v1196
      %v1349 = vmul.f32 %v1348, %v1347
      %v1350 = vmul.f32 0.5, %v1349
      %v1351 = vsub.f32 1.5, %v1350
      %v1352 = vmul.f32 %v1347, %v1351
      %vm1353 = vweird.f32 %v1196
      %vm1354 = vweird.f32 %v1347
      %vm1355 = vmor %vm1353, %vm1354
      %v1356 = vsel %vm1355, %v1347, %v1352
      %v1357 = vmul.f32 %v1021, %v1206
      %v1358 = vmul.f32 %v1022, %v1216
      %v1359 = vmul.f32 %v1023, %v1226
      %v1360 = vmul.f32 %v1024, %v1236
      %v1361 = vmul.f32 %v1025, %v1246
      %v1362 = vmul.f32 %v1026, %v1256
      %v1363 = vmul.f32 %v1027, %v1266
      %v1364 = vmul.f32 %v1028, %v1276
      %v1365 = vmul.f32 %v1029, %v1286
      %v1366 = vmul.f32 %v1030, %v1296
      %v1367 = vmul.f32 %v1031, %v1306
      %v1368 = vmul.f32 %v1032, %v1316
      %v1369 = vmul.f32 %v1033, %v1326
      %v1370 = vmul.f32 %v1034, %v1336
      %v1371 = vmul.f32 %v1035, %v1346
      %v1372 = vmul.f32 %v1036, %v1356
      %v1373 = vld [vmem:[%s3 + $0x1] sm:$0x1]
      %v1374 = vld [vmem:[%s3 + $0x2] sm:$0x1]
      %v1375 = vperm.slane %v1374, 0
      %v1376 = vmul.f32 %v1375, %v1357
      %v1377 = vmul.f32 %v1375, %v1358
      %v1378 = vmul.f32 %v1375, %v1359
      %v1379 = vmul.f32 %v1375, %v1360
      %v1380 = vmul.f32 %v1375, %v1361
      %v1381 = vmul.f32 %v1375, %v1362
      %v1382 = vmul.f32 %v1375, %v1363
      %v1383 = vmul.f32 %v1375, %v1364
      %v1384 = vmul.f32 %v1375, %v1365
      %v1385 = vmul.f32 %v1375, %v1366
      %v1386 = vmul.f32 %v1375, %v1367
      %v1387 = vmul.f32 %v1375, %v1368
      %v1388 = vmul.f32 %v1375, %v1369
      %v1389 = vmul.f32 %v1375, %v1370
      %v1390 = vmul.f32 %v1375, %v1371
      %v1391 = vmul.f32 %v1375, %v1372
      %v1392 = vxor.u32 %v1376, 2147483648
      %v1393 = vxor.u32 %v1377, 2147483648
      %v1394 = vxor.u32 %v1378, 2147483648
      %v1395 = vxor.u32 %v1379, 2147483648
      %v1396 = vxor.u32 %v1380, 2147483648
      %v1397 = vxor.u32 %v1381, 2147483648
      %v1398 = vxor.u32 %v1382, 2147483648
      %v1399 = vxor.u32 %v1383, 2147483648
      %v1400 = vxor.u32 %v1384, 2147483648
      %v1401 = vxor.u32 %v1385, 2147483648
      %v1402 = vxor.u32 %v1386, 2147483648
      %v1403 = vxor.u32 %v1387, 2147483648
      %v1404 = vxor.u32 %v1388, 2147483648
      %v1405 = vxor.u32 %v1389, 2147483648
      %v1406 = vxor.u32 %v1390, 2147483648
      %v1407 = vxor.u32 %v1391, 2147483648
      %v1408 = vmul.f32 %v1392, 1.442695
      %v1409 = vpow.pop %v1408
      %v1410 = vmul.f32 %v1393, 1.442695
      %v1411 = vpow.pop %v1410
      %v1412 = vmul.f32 %v1394, 1.442695
      %v1413 = vpow.pop %v1412
      %v1414 = vmul.f32 %v1395, 1.442695
      %v1415 = vpow.pop %v1414
      %v1416 = vmul.f32 %v1396, 1.442695
      %v1417 = vpow.pop %v1416
      %v1418 = vmul.f32 %v1397, 1.442695
      %v1419 = vpow.pop %v1418
      %v1420 = vmul.f32 %v1398, 1.442695
      %v1421 = vpow.pop %v1420
      %v1422 = vmul.f32 %v1399, 1.442695
      %v1423 = vpow.pop %v1422
      %v1424 = vmul.f32 %v1400, 1.442695
      %v1425 = vpow.pop %v1424
      %v1426 = vmul.f32 %v1401, 1.442695
      %v1427 = vpow.pop %v1426
      %v1428 = vmul.f32 %v1402, 1.442695
      %v1429 = vpow.pop %v1428
      %v1430 = vmul.f32 %v1403, 1.442695
      %v1431 = vpow.pop %v1430
      %v1432 = vmul.f32 %v1404, 1.442695
      %v1433 = vpow.pop %v1432
      %v1434 = vmul.f32 %v1405, 1.442695
      %v1435 = vpow.pop %v1434
      %v1436 = vmul.f32 %v1406, 1.442695
      %v1437 = vpow.pop %v1436
      %v1438 = vmul.f32 %v1407, 1.442695
      %v1439 = vpow.pop %v1438
      %v1440 = vadd.f32 %v1409, 1.0
      %v1441 = vadd.f32 %v1411, 1.0
      %v1442 = vadd.f32 %v1413, 1.0
      %v1443 = vadd.f32 %v1415, 1.0
      %v1444 = vadd.f32 %v1417, 1.0
      %v1445 = vadd.f32 %v1419, 1.0
      %v1446 = vadd.f32 %v1421, 1.0
      %v1447 = vadd.f32 %v1423, 1.0
      %v1448 = vadd.f32 %v1425, 1.0
      %v1449 = vadd.f32 %v1427, 1.0
      %v1450 = vadd.f32 %v1429, 1.0
      %v1451 = vadd.f32 %v1431, 1.0
      %v1452 = vadd.f32 %v1433, 1.0
      %v1453 = vadd.f32 %v1435, 1.0
      %v1454 = vadd.f32 %v1437, 1.0
      %v1455 = vadd.f32 %v1439, 1.0
      %v1456 = vrcp.pop %v1440
      %v1457 = vmul.f32 %v1440, %v1456
      %v1458 = vsub.f32 1.0, %v1457
      %v1459 = vmul.f32 %v1456, %v1458
      %v1460 = vadd.f32 %v1456, %v1459
      %vm1461 = vweird.f32 %v1440
      %vm1462 = vweird.f32 %v1456
      %vm1463 = vmor %vm1461, %vm1462
      %v1464 = vsel %vm1463, %v1456, %v1460
      %v1465 = vand.u32 2147483647, %v1440
      %vm1466 = vcmp.eq.f32.partialorder %v1465, 8.507059e+37
      %v1467 = vand.u32 %v1440, 2147483648
      %v1468 = vor.u32 1.1754944e-38, %v1467
      %v1469 = vsel %vm1466, %v1468, %v1464
      %v1470 = vmul.f32 1.0, %v1469
      %v1471 = vrcp.pop %v1441
      %v1472 = vmul.f32 %v1441, %v1471
      %v1473 = vsub.f32 1.0, %v1472
      %v1474 = vmul.f32 %v1471, %v1473
      %v1475 = vadd.f32 %v1471, %v1474
      %vm1476 = vweird.f32 %v1441
      %vm1477 = vweird.f32 %v1471
      %vm1478 = vmor %vm1476, %vm1477
      %v1479 = vsel %vm1478, %v1471, %v1475
      %v1480 = vand.u32 2147483647, %v1441
      %vm1481 = vcmp.eq.f32.partialorder %v1480, 8.507059e+37
      %v1482 = vand.u32 %v1441, 2147483648
      %v1483 = vor.u32 1.1754944e-38, %v1482
      %v1484 = vsel %vm1481, %v1483, %v1479
      %v1485 = vmul.f32 1.0, %v1484
      %v1486 = vrcp.pop %v1442
      %v1487 = vmul.f32 %v1442, %v1486
      %v1488 = vsub.f32 1.0, %v1487
      %v1489 = vmul.f32 %v1486, %v1488
      %v1490 = vadd.f32 %v1486, %v1489
      %vm1491 = vweird.f32 %v1442
      %vm1492 = vweird.f32 %v1486
      %vm1493 = vmor %vm1491, %vm1492
      %v1494 = vsel %vm1493, %v1486, %v1490
      %v1495 = vand.u32 2147483647, %v1442
      %vm1496 = vcmp.eq.f32.partialorder %v1495, 8.507059e+37
      %v1497 = vand.u32 %v1442, 2147483648
      %v1498 = vor.u32 1.1754944e-38, %v1497
      %v1499 = vsel %vm1496, %v1498, %v1494
      %v1500 = vmul.f32 1.0, %v1499
      %v1501 = vrcp.pop %v1443
      %v1502 = vmul.f32 %v1443, %v1501
      %v1503 = vsub.f32 1.0, %v1502
      %v1504 = vmul.f32 %v1501, %v1503
      %v1505 = vadd.f32 %v1501, %v1504
      %vm1506 = vweird.f32 %v1443
      %vm1507 = vweird.f32 %v1501
      %vm1508 = vmor %vm1506, %vm1507
      %v1509 = vsel %vm1508, %v1501, %v1505
      %v1510 = vand.u32 2147483647, %v1443
      %vm1511 = vcmp.eq.f32.partialorder %v1510, 8.507059e+37
      %v1512 = vand.u32 %v1443, 2147483648
      %v1513 = vor.u32 1.1754944e-38, %v1512
      %v1514 = vsel %vm1511, %v1513, %v1509
      %v1515 = vmul.f32 1.0, %v1514
      %v1516 = vrcp.pop %v1444
      %v1517 = vmul.f32 %v1444, %v1516
      %v1518 = vsub.f32 1.0, %v1517
      %v1519 = vmul.f32 %v1516, %v1518
      %v1520 = vadd.f32 %v1516, %v1519
      %vm1521 = vweird.f32 %v1444
      %vm1522 = vweird.f32 %v1516
      %vm1523 = vmor %vm1521, %vm1522
      %v1524 = vsel %vm1523, %v1516, %v1520
      %v1525 = vand.u32 2147483647, %v1444
      %vm1526 = vcmp.eq.f32.partialorder %v1525, 8.507059e+37
      %v1527 = vand.u32 %v1444, 2147483648
      %v1528 = vor.u32 1.1754944e-38, %v1527
      %v1529 = vsel %vm1526, %v1528, %v1524
      %v1530 = vmul.f32 1.0, %v1529
      %v1531 = vrcp.pop %v1445
      %v1532 = vmul.f32 %v1445, %v1531
      %v1533 = vsub.f32 1.0, %v1532
      %v1534 = vmul.f32 %v1531, %v1533
      %v1535 = vadd.f32 %v1531, %v1534
      %vm1536 = vweird.f32 %v1445
      %vm1537 = vweird.f32 %v1531
      %vm1538 = vmor %vm1536, %vm1537
      %v1539 = vsel %vm1538, %v1531, %v1535
      %v1540 = vand.u32 2147483647, %v1445
      %vm1541 = vcmp.eq.f32.partialorder %v1540, 8.507059e+37
      %v1542 = vand.u32 %v1445, 2147483648
      %v1543 = vor.u32 1.1754944e-38, %v1542
      %v1544 = vsel %vm1541, %v1543, %v1539
      %v1545 = vmul.f32 1.0, %v1544
      %v1546 = vrcp.pop %v1446
      %v1547 = vmul.f32 %v1446, %v1546
      %v1548 = vsub.f32 1.0, %v1547
      %v1549 = vmul.f32 %v1546, %v1548
      %v1550 = vadd.f32 %v1546, %v1549
      %vm1551 = vweird.f32 %v1446
      %vm1552 = vweird.f32 %v1546
      %vm1553 = vmor %vm1551, %vm1552
      %v1554 = vsel %vm1553, %v1546, %v1550
      %v1555 = vand.u32 2147483647, %v1446
      %vm1556 = vcmp.eq.f32.partialorder %v1555, 8.507059e+37
      %v1557 = vand.u32 %v1446, 2147483648
      %v1558 = vor.u32 1.1754944e-38, %v1557
      %v1559 = vsel %vm1556, %v1558, %v1554
      %v1560 = vmul.f32 1.0, %v1559
      %v1561 = vrcp.pop %v1447
      %v1562 = vmul.f32 %v1447, %v1561
      %v1563 = vsub.f32 1.0, %v1562
      %v1564 = vmul.f32 %v1561, %v1563
      %v1565 = vadd.f32 %v1561, %v1564
      %vm1566 = vweird.f32 %v1447
      %vm1567 = vweird.f32 %v1561
      %vm1568 = vmor %vm1566, %vm1567
      %v1569 = vsel %vm1568, %v1561, %v1565
      %v1570 = vand.u32 2147483647, %v1447
      %vm1571 = vcmp.eq.f32.partialorder %v1570, 8.507059e+37
      %v1572 = vand.u32 %v1447, 2147483648
      %v1573 = vor.u32 1.1754944e-38, %v1572
      %v1574 = vsel %vm1571, %v1573, %v1569
      %v1575 = vmul.f32 1.0, %v1574
      %v1576 = vrcp.pop %v1448
      %v1577 = vmul.f32 %v1448, %v1576
      %v1578 = vsub.f32 1.0, %v1577
      %v1579 = vmul.f32 %v1576, %v1578
      %v1580 = vadd.f32 %v1576, %v1579
      %vm1581 = vweird.f32 %v1448
      %vm1582 = vweird.f32 %v1576
      %vm1583 = vmor %vm1581, %vm1582
      %v1584 = vsel %vm1583, %v1576, %v1580
      %v1585 = vand.u32 2147483647, %v1448
      %vm1586 = vcmp.eq.f32.partialorder %v1585, 8.507059e+37
      %v1587 = vand.u32 %v1448, 2147483648
      %v1588 = vor.u32 1.1754944e-38, %v1587
      %v1589 = vsel %vm1586, %v1588, %v1584
      %v1590 = vmul.f32 1.0, %v1589
      %v1591 = vrcp.pop %v1449
      %v1592 = vmul.f32 %v1449, %v1591
      %v1593 = vsub.f32 1.0, %v1592
      %v1594 = vmul.f32 %v1591, %v1593
      %v1595 = vadd.f32 %v1591, %v1594
      %vm1596 = vweird.f32 %v1449
      %vm1597 = vweird.f32 %v1591
      %vm1598 = vmor %vm1596, %vm1597
      %v1599 = vsel %vm1598, %v1591, %v1595
      %v1600 = vand.u32 2147483647, %v1449
      %vm1601 = vcmp.eq.f32.partialorder %v1600, 8.507059e+37
      %v1602 = vand.u32 %v1449, 2147483648
      %v1603 = vor.u32 1.1754944e-38, %v1602
      %v1604 = vsel %vm1601, %v1603, %v1599
      %v1605 = vmul.f32 1.0, %v1604
      %v1606 = vrcp.pop %v1450
      %v1607 = vmul.f32 %v1450, %v1606
      %v1608 = vsub.f32 1.0, %v1607
      %v1609 = vmul.f32 %v1606, %v1608
      %v1610 = vadd.f32 %v1606, %v1609
      %vm1611 = vweird.f32 %v1450
      %vm1612 = vweird.f32 %v1606
      %vm1613 = vmor %vm1611, %vm1612
      %v1614 = vsel %vm1613, %v1606, %v1610
      %v1615 = vand.u32 2147483647, %v1450
      %vm1616 = vcmp.eq.f32.partialorder %v1615, 8.507059e+37
      %v1617 = vand.u32 %v1450, 2147483648
      %v1618 = vor.u32 1.1754944e-38, %v1617
      %v1619 = vsel %vm1616, %v1618, %v1614
      %v1620 = vmul.f32 1.0, %v1619
      %v1621 = vrcp.pop %v1451
      %v1622 = vmul.f32 %v1451, %v1621
      %v1623 = vsub.f32 1.0, %v1622
      %v1624 = vmul.f32 %v1621, %v1623
      %v1625 = vadd.f32 %v1621, %v1624
      %vm1626 = vweird.f32 %v1451
      %vm1627 = vweird.f32 %v1621
      %vm1628 = vmor %vm1626, %vm1627
      %v1629 = vsel %vm1628, %v1621, %v1625
      %v1630 = vand.u32 2147483647, %v1451
      %vm1631 = vcmp.eq.f32.partialorder %v1630, 8.507059e+37
      %v1632 = vand.u32 %v1451, 2147483648
      %v1633 = vor.u32 1.1754944e-38, %v1632
      %v1634 = vsel %vm1631, %v1633, %v1629
      %v1635 = vmul.f32 1.0, %v1634
      %v1636 = vrcp.pop %v1452
      %v1637 = vmul.f32 %v1452, %v1636
      %v1638 = vsub.f32 1.0, %v1637
      %v1639 = vmul.f32 %v1636, %v1638
      %v1640 = vadd.f32 %v1636, %v1639
      %vm1641 = vweird.f32 %v1452
      %vm1642 = vweird.f32 %v1636
      %vm1643 = vmor %vm1641, %vm1642
      %v1644 = vsel %vm1643, %v1636, %v1640
      %v1645 = vand.u32 2147483647, %v1452
      %vm1646 = vcmp.eq.f32.partialorder %v1645, 8.507059e+37
      %v1647 = vand.u32 %v1452, 2147483648
      %v1648 = vor.u32 1.1754944e-38, %v1647
      %v1649 = vsel %vm1646, %v1648, %v1644
      %v1650 = vmul.f32 1.0, %v1649
      %v1651 = vrcp.pop %v1453
      %v1652 = vmul.f32 %v1453, %v1651
      %v1653 = vsub.f32 1.0, %v1652
      %v1654 = vmul.f32 %v1651, %v1653
      %v1655 = vadd.f32 %v1651, %v1654
      %vm1656 = vweird.f32 %v1453
      %vm1657 = vweird.f32 %v1651
      %vm1658 = vmor %vm1656, %vm1657
      %v1659 = vsel %vm1658, %v1651, %v1655
      %v1660 = vand.u32 2147483647, %v1453
      %vm1661 = vcmp.eq.f32.partialorder %v1660, 8.507059e+37
      %v1662 = vand.u32 %v1453, 2147483648
      %v1663 = vor.u32 1.1754944e-38, %v1662
      %v1664 = vsel %vm1661, %v1663, %v1659
      %v1665 = vmul.f32 1.0, %v1664
      %v1666 = vrcp.pop %v1454
      %v1667 = vmul.f32 %v1454, %v1666
      %v1668 = vsub.f32 1.0, %v1667
      %v1669 = vmul.f32 %v1666, %v1668
      %v1670 = vadd.f32 %v1666, %v1669
      %vm1671 = vweird.f32 %v1454
      %vm1672 = vweird.f32 %v1666
      %vm1673 = vmor %vm1671, %vm1672
      %v1674 = vsel %vm1673, %v1666, %v1670
      %v1675 = vand.u32 2147483647, %v1454
      %vm1676 = vcmp.eq.f32.partialorder %v1675, 8.507059e+37
      %v1677 = vand.u32 %v1454, 2147483648
      %v1678 = vor.u32 1.1754944e-38, %v1677
      %v1679 = vsel %vm1676, %v1678, %v1674
      %v1680 = vmul.f32 1.0, %v1679
      %v1681 = vrcp.pop %v1455
      %v1682 = vmul.f32 %v1455, %v1681
      %v1683 = vsub.f32 1.0, %v1682
      %v1684 = vmul.f32 %v1681, %v1683
      %v1685 = vadd.f32 %v1681, %v1684
      %vm1686 = vweird.f32 %v1455
      %vm1687 = vweird.f32 %v1681
      %vm1688 = vmor %vm1686, %vm1687
      %v1689 = vsel %vm1688, %v1681, %v1685
      %v1690 = vand.u32 2147483647, %v1455
      %vm1691 = vcmp.eq.f32.partialorder %v1690, 8.507059e+37
      %v1692 = vand.u32 %v1455, 2147483648
      %v1693 = vor.u32 1.1754944e-38, %v1692
      %v1694 = vsel %vm1691, %v1693, %v1689
      %v1695 = vmul.f32 1.0, %v1694
      %v1696 = vsub.f32 1.0, %v1470
      %v1697 = vsub.f32 1.0, %v1485
      %v1698 = vsub.f32 1.0, %v1500
      %v1699 = vsub.f32 1.0, %v1515
      %v1700 = vsub.f32 1.0, %v1530
      %v1701 = vsub.f32 1.0, %v1545
      %v1702 = vsub.f32 1.0, %v1560
      %v1703 = vsub.f32 1.0, %v1575
      %v1704 = vsub.f32 1.0, %v1590
      %v1705 = vsub.f32 1.0, %v1605
      %v1706 = vsub.f32 1.0, %v1620
      %v1707 = vsub.f32 1.0, %v1635
      %v1708 = vsub.f32 1.0, %v1650
      %v1709 = vsub.f32 1.0, %v1665
      %v1710 = vsub.f32 1.0, %v1680
      %v1711 = vsub.f32 1.0, %v1695
      %v1712 = vperm.slane %v1373, 0
      %v1713 = vmul.f32 %v1712, %v1696
      %v1714 = vmul.f32 %v1712, %v1697
      %v1715 = vmul.f32 %v1712, %v1698
      %v1716 = vmul.f32 %v1712, %v1699
      %v1717 = vmul.f32 %v1712, %v1700
      %v1718 = vmul.f32 %v1712, %v1701
      %v1719 = vmul.f32 %v1712, %v1702
      %v1720 = vmul.f32 %v1712, %v1703
      %v1721 = vmul.f32 %v1712, %v1704
      %v1722 = vmul.f32 %v1712, %v1705
      %v1723 = vmul.f32 %v1712, %v1706
      %v1724 = vmul.f32 %v1712, %v1707
      %v1725 = vmul.f32 %v1712, %v1708
      %v1726 = vmul.f32 %v1712, %v1709
      %v1727 = vmul.f32 %v1712, %v1710
      %v1728 = vmul.f32 %v1712, %v1711
      %v1729 = vadd.f32 %v1470, %v1713
      %v1730 = vadd.f32 %v1485, %v1714
      %v1731 = vadd.f32 %v1500, %v1715
      %v1732 = vadd.f32 %v1515, %v1716
      %v1733 = vadd.f32 %v1530, %v1717
      %v1734 = vadd.f32 %v1545, %v1718
      %v1735 = vadd.f32 %v1560, %v1719
      %v1736 = vadd.f32 %v1575, %v1720
      %v1737 = vadd.f32 %v1590, %v1721
      %v1738 = vadd.f32 %v1605, %v1722
      %v1739 = vadd.f32 %v1620, %v1723
      %v1740 = vadd.f32 %v1635, %v1724
      %v1741 = vadd.f32 %v1650, %v1725
      %v1742 = vadd.f32 %v1665, %v1726
      %v1743 = vadd.f32 %v1680, %v1727
      %v1744 = vadd.f32 %v1695, %v1728
      %v1745 = vmul.f32 %v869, %v1729
      %v1746 = vmul.f32 %v870, %v1730
      %v1747 = vmul.f32 %v871, %v1731
      %v1748 = vmul.f32 %v872, %v1732
      %v1749 = vmul.f32 %v873, %v1733
      %v1750 = vmul.f32 %v874, %v1734
      %v1751 = vmul.f32 %v875, %v1735
      %v1752 = vmul.f32 %v876, %v1736
      %v1753 = vmul.f32 %v877, %v1737
      %v1754 = vmul.f32 %v878, %v1738
      %v1755 = vmul.f32 %v879, %v1739
      %v1756 = vmul.f32 %v880, %v1740
      %v1757 = vmul.f32 %v881, %v1741
      %v1758 = vmul.f32 %v882, %v1742
      %v1759 = vmul.f32 %v883, %v1743
      %v1760 = vmul.f32 %v884, %v1744
      %v1761 = vld [vmem:[%s3 + $0x3] sm:$0x1]
      %v1762 = vld [vmem:[%s3 + $0x4] sm:$0x1]
      %v1763 = vperm.slane %v1761, 0
      %v1764 = vmul.f32 %v1745, %v1763
      %v1765 = vmul.f32 %v1746, %v1763
      %v1766 = vmul.f32 %v1747, %v1763
      %v1767 = vmul.f32 %v1748, %v1763
      %v1768 = vmul.f32 %v1749, %v1763
      %v1769 = vmul.f32 %v1750, %v1763
      %v1770 = vmul.f32 %v1751, %v1763
      %v1771 = vmul.f32 %v1752, %v1763
      %v1772 = vmul.f32 %v1753, %v1763
      %v1773 = vmul.f32 %v1754, %v1763
      %v1774 = vmul.f32 %v1755, %v1763
      %v1775 = vmul.f32 %v1756, %v1763
      %v1776 = vmul.f32 %v1757, %v1763
      %v1777 = vmul.f32 %v1758, %v1763
      %v1778 = vmul.f32 %v1759, %v1763
      %v1779 = vmul.f32 %v1760, %v1763
      %v1780 = vsel %vm885, %v1764, 0.0
      %1781 = vadd.xlane.f32.xlu0 %v1780
      %v1782 = vpop.xlane.xlu0 %1781
      %v1783 = vsel %vm885, %v1765, 0.0
      %1784 = vadd.xlane.f32.xlu0 %v1783
      %v1785 = vpop.xlane.xlu0 %1784
      %v1786 = vsel %vm885, %v1766, 0.0
      %1787 = vadd.xlane.f32.xlu0 %v1786
      %v1788 = vpop.xlane.xlu0 %1787
      %v1789 = vsel %vm885, %v1767, 0.0
      %1790 = vadd.xlane.f32.xlu0 %v1789
      %v1791 = vpop.xlane.xlu0 %1790
      %v1792 = vsel %vm885, %v1768, 0.0
      %1793 = vadd.xlane.f32.xlu0 %v1792
      %v1794 = vpop.xlane.xlu0 %1793
      %v1795 = vsel %vm885, %v1769, 0.0
      %1796 = vadd.xlane.f32.xlu0 %v1795
      %v1797 = vpop.xlane.xlu0 %1796
      %v1798 = vsel %vm885, %v1770, 0.0
      %1799 = vadd.xlane.f32.xlu0 %v1798
      %v1800 = vpop.xlane.xlu0 %1799
      %v1801 = vsel %vm885, %v1771, 0.0
      %1802 = vadd.xlane.f32.xlu0 %v1801
      %v1803 = vpop.xlane.xlu0 %1802
      %v1804 = vsel %vm885, %v1772, 0.0
      %1805 = vadd.xlane.f32.xlu0 %v1804
      %v1806 = vpop.xlane.xlu0 %1805
      %v1807 = vsel %vm885, %v1773, 0.0
      %1808 = vadd.xlane.f32.xlu0 %v1807
      %v1809 = vpop.xlane.xlu0 %1808
      %v1810 = vsel %vm885, %v1774, 0.0
      %1811 = vadd.xlane.f32.xlu0 %v1810
      %v1812 = vpop.xlane.xlu0 %1811
      %v1813 = vsel %vm885, %v1775, 0.0
      %1814 = vadd.xlane.f32.xlu0 %v1813
      %v1815 = vpop.xlane.xlu0 %1814
      %v1816 = vsel %vm885, %v1776, 0.0
      %1817 = vadd.xlane.f32.xlu0 %v1816
      %v1818 = vpop.xlane.xlu0 %1817
      %v1819 = vsel %vm885, %v1777, 0.0
      %1820 = vadd.xlane.f32.xlu0 %v1819
      %v1821 = vpop.xlane.xlu0 %1820
      %v1822 = vsel %vm885, %v1778, 0.0
      %1823 = vadd.xlane.f32.xlu0 %v1822
      %v1824 = vpop.xlane.xlu0 %1823
      %v1825 = vsel %vm885, %v1779, 0.0
      %1826 = vadd.xlane.f32.xlu0 %v1825
      %v1827 = vpop.xlane.xlu0 %1826
      %s1829 = vtos %v1762
      %v1830 = vstv %s1829
      %v1832 = vadd.f32 %v1782, %v1830
      %v1833 = vadd.f32 %v1785, %v1830
      %v1834 = vadd.f32 %v1788, %v1830
      %v1835 = vadd.f32 %v1791, %v1830
      %v1836 = vadd.f32 %v1794, %v1830
      %v1837 = vadd.f32 %v1797, %v1830
      %v1838 = vadd.f32 %v1800, %v1830
      %v1839 = vadd.f32 %v1803, %v1830
      %v1840 = vadd.f32 %v1806, %v1830
      %v1841 = vadd.f32 %v1809, %v1830
      %v1842 = vadd.f32 %v1812, %v1830
      %v1843 = vadd.f32 %v1815, %v1830
      %v1844 = vadd.f32 %v1818, %v1830
      %v1845 = vadd.f32 %v1821, %v1830
      %v1846 = vadd.f32 %v1824, %v1830
      %v1847 = vadd.f32 %v1827, %v1830
      %v1864 = vlaneseq
      %v1865 = vand.u32 %v1864, 127
      %v1866 = vperm.slane %v1832, %v1865
      %v1867 = vperm.slane %v1833, %v1865
      %v1868 = vperm.slane %v1834, %v1865
      %v1869 = vperm.slane %v1835, %v1865
      %v1870 = vperm.slane %v1836, %v1865
      %v1871 = vperm.slane %v1837, %v1865
      %v1872 = vperm.slane %v1838, %v1865
      %v1873 = vperm.slane %v1839, %v1865
      %v1874 = vperm.slane %v1840, %v1865
      %v1875 = vperm.slane %v1841, %v1865
      %v1876 = vperm.slane %v1842, %v1865
      %v1877 = vperm.slane %v1843, %v1865
      %v1878 = vperm.slane %v1844, %v1865
      %v1879 = vperm.slane %v1845, %v1865
      %v1880 = vperm.slane %v1846, %v1865
      %v1881 = vperm.slane %v1847, %v1865
      %vm1882 = vcmask 1041409
      %v1883 = vsel %vm1882, %v1867, %v1866
      %vm1884 = vcmask 1042434
      %v1885 = vsel %vm1884, %v1868, %v1883
      %vm1886 = vcmask 1043459
      %v1887 = vsel %vm1886, %v1869, %v1885
      %vm1888 = vcmask 1044484
      %v1889 = vsel %vm1888, %v1870, %v1887
      %vm1890 = vcmask 1045509
      %v1891 = vsel %vm1890, %v1871, %v1889
      %vm1892 = vcmask 1046534
      %v1893 = vsel %vm1892, %v1872, %v1891
      %vm1894 = vcmask 1047559
      %v1895 = vsel %vm1894, %v1873, %v1893
      %v1896 = vsel %vm1882, %v1875, %v1874
      %v1897 = vsel %vm1884, %v1876, %v1896
      %v1898 = vsel %vm1886, %v1877, %v1897
      %v1899 = vsel %vm1888, %v1878, %v1898
      %v1900 = vsel %vm1890, %v1879, %v1899
      %v1901 = vsel %vm1892, %v1880, %v1900
      %v1902 = vsel %vm1894, %v1881, %v1901
      %1905 = vst.msk [vmem:[%s199] sm:$0xff] %vm656, %v1895
      %1906 = vst.msk [vmem:[%s199 + $0x8] sm:$0xff] %vm656, %v1902
      %s1907 = smul.u32 2, %s15
      %p1908 = scmp.lt.s32.totalorder %s1907, 7
      %s1909 = scalar_select %p1908, %s1907, 7
      %s1910 = smul.addr %s1909, 8
      %s1911 = scalar_lea.vmem %s4, %s1910
      // Predicated region
      $region37: #{activation_unit_batched.1} parent=35 // pred_check
        %p1912 = pneg %p122
      $region38: #{activation_unit_batched.1} parent=35 // pred_check_branch
        %1914 = sbr.rel (%p1912) target = $region40
      $region39: #{activation_unit_batched.1} parent=35 // pred_region
        %s1915 = smul.u32 2, %s15
      $region40: #{activation_unit_batched.1} parent=35 // pred_fallthru
        _
    $region36: #{activation_unit_batched.1} parent=5 // pred_fallthru
      _
    %p1916 = scmp.le.s32.totalorder 2, %s10
    // Predicated region
    $region41: #{activation_unit_batched.1} parent=5 // pred_check
      %p1917 = pneg %p1916
    $region42: #{activation_unit_batched.1} parent=5 // pred_check_branch
      %1919 = sbr.rel (%p1917) target = $region44
    $region43: #{activation_unit_batched.1} parent=5 // pred_region
      %s1920 = ssub.s32 %s10, 2
      // Predicated region
      $region45: #{activation_unit_batched.1} parent=43 // pred_check
        %p1921 = pneg %p128
      $region46: #{activation_unit_batched.1} parent=43 // pred_check_branch
        %1923 = sbr.rel (%p1921) target = $region48
      $region47: #{activation_unit_batched.1} parent=43 // pred_region
        %s1924 = smul.u32 2, %s16
        %p1925 = scmp.lt.s32.totalorder %s1924, 7
        %s1926 = scalar_select %p1925, %s1924, 7
        %s1927 = smul.addr %s1926, 8
        %s1928 = scalar_lea.vmem %s4, %s1927
      $region48: #{activation_unit_batched.1} parent=43 // pred_fallthru
        _
    $region44: #{activation_unit_batched.1} parent=5 // pred_fallthru
      _
  $region6: #{activation_unit_batched.1} parent=0 // loop_footer
    %s14 = sadd.s32 1, %s10
  $region7: #{activation_unit_batched.1} parent=0 // loop_footer_branch
    %9 = sbr.rel target = $region3
  $region8: #{activation_unit_batched.1} parent=0 // loop_exit
    _

</llo_original>
